<compile_context>
chip_gen: v7x
topology: tpu7x:2x2x1
jax: 0.10.0
libtpu: 0.0.40
codegen_flags: <defaults>
</compile_context>

<pallas_src>
import functools

import jax
import jax.numpy as jnp
from jax import lax
from jax.experimental import pallas as pl
from jax.experimental.pallas import tpu as pltpu


# ------------------------------ Pallas kernel ------------------------------ #

def _fused_kernel(x_ref, w_ref, mask_ref, gamma_ref, beta_ref, o_ref,
                  xk_ref, sum_ref, ssq_ref, y_ref, *,
                  nb, cg, fg, kh, kw, wp, chunks, count, eps,
                  cache_y, nchunks):
    """One grid step at (group gi, phase p, batch-chunk ni).

    x_ref    : (nb, 1, Cg, Hpad*Wp + extra) bf16  padded input slab (flat spatial)
    w_ref    : (1, Fg, kh*kw*Cg)            bf16  stacked-K weight matrix
    mask_ref : (1, Lpad)                    f32   1.0 at valid output positions
    gamma/beta: (1, Fg, 1)                  f32
    o_ref    : (nb, 1, Fg, Lpad)            f32
    xk_ref   : (kh*kw*Cg, nb*LT)            bf16  stacked-K RHS scratch
    sum/ssq  : (Fg, 1)                      f32   running batch statistics
    y_ref    : (nchunks*nb*Fg, Lpad)        f32   conv-output cache (if cache_y)
    """
    p = pl.program_id(1)
    ni = pl.program_id(2)

    def conv_chunk(lo, w):
        # Stack the kh*kw shifted (Cg, w) views of every image into the MXU
        # contraction dim -> one (Fg, kh*kw*Cg) @ (kh*kw*Cg, nb*w) dot.
        for b in range(nb):
            t = 0
            for i in range(kh):
                for j in range(kw):
                    d = i * wp + j
                    xk_ref[t * cg:(t + 1) * cg, b * w:(b + 1) * w] = (
                        x_ref[b, 0, :, lo + d:lo + d + w])
                    t += 1
        return jnp.dot(w_ref[0], xk_ref[:, :nb * w],
                       preferred_element_type=jnp.float32)       # (Fg, nb*w) f32

    def y_cache_rows(b):
        if nchunks == 1:                        # static row offset (common case)
            return slice(b * fg, (b + 1) * fg)
        row = pl.multiple_of((ni * nb + b) * fg, fg)
        return pl.ds(row, fg)

    @pl.when(jnp.logical_and(p == 0, ni == 0))
    def _():
        sum_ref[...] = jnp.zeros_like(sum_ref)
        ssq_ref[...] = jnp.zeros_like(ssq_ref)

    @pl.when(p == 0)
    def _():
        s = jnp.zeros((fg, 1), jnp.float32)
        sq = jnp.zeros((fg, 1), jnp.float32)
        for (lo, w) in chunks:
            y = conv_chunk(lo, w)
            m = mask_ref[:, lo:lo + w]                           # (1, w)
            for b in range(nb):
                yb = y[:, b * w:(b + 1) * w]
                ym = yb * m                                      # drop pad lanes
                s = s + jnp.sum(ym, axis=1, keepdims=True)
                sq = sq + jnp.sum(ym * yb, axis=1, keepdims=True)
                if cache_y:
                    y_ref[y_cache_rows(b), lo:lo + w] = yb
        sum_ref[...] += s
        ssq_ref[...] += sq

    @pl.when(p == 1)
    def _():
        inv_n = 1.0 / count
        mean = sum_ref[...] * inv_n                              # (Fg, 1)
        # TODO(synk): E[y^2] - mean^2 can cancel for large DC offsets; a shifted
        # two-pass variance would be safer at tighter tolerances.
        var = jnp.maximum(ssq_ref[...] * inv_n - mean * mean, 0.0)
        scale = gamma_ref[0] * lax.rsqrt(var + eps)
        shift = beta_ref[0] - mean * scale

        def apply(yb):
            z = yb * scale + shift
            return z * jnp.clip(z + 3.0, 0.0, 6.0) * (1.0 / 6.0)

        for (lo, w) in chunks:
            if cache_y:
                for b in range(nb):
                    o_ref[b, 0, :, lo:lo + w] = apply(
                        y_ref[y_cache_rows(b), lo:lo + w])
            else:
                y = conv_chunk(lo, w)        # recompute: y cache did not fit VMEM
                for b in range(nb):
                    o_ref[b, 0, :, lo:lo + w] = apply(y[:, b * w:(b + 1) * w])


# --------------------------------- wrapper --------------------------------- #

@functools.partial(jax.jit, static_argnames=("stride", "groups", "eps"))
def conv_bn_hardswish(x_nchw, weight, gamma, beta, *, stride, groups, eps=1e-5):
    """Forward of ConvBNLayer.  x_nchw: (N,C,H,W) f32, weight: (F,C//G,KH,KW).
    Returns (N, F, OH, OW) f32 in NCHW."""
    n, c, h, w = x_nchw.shape
    f, cg, kh, kw = weight.shape
    g = groups
    assert c == cg * g and f % g == 0
    assert stride == 1, "fused Pallas ConvBNLayer currently supports stride=1"

    fg = f // g
    pad = (kh - 1) // 2
    hp, wp = h + 2 * pad, w + 2 * pad
    oh, ow = hp - kh + 1, wp - kw + 1
    l_flat = oh * wp                              # flat output length (Wp stride)
    l_pad = ((l_flat + 127) // 128) * 128         # lane-dense padded output width
    d_max = (kh - 1) * wp + (kw - 1)              # largest tap shift
    hpwp_x = d_max + l_pad                        # input slab width (all shifts valid)
    ktot = kh * kw * cg                           # stacked contraction length
    count = float(n * oh * ow)                    # BN normalizes over N*OH*OW

    # ---- hardware-aware sizing (v7x has half the VMEM of v5e/v6e) ----
    try:
        vmem_cap = int(pltpu.get_tpu_info().vmem_capacity_bytes)
    except Exception:
        vmem_cap = 64 * 1024 * 1024
    budget = vmem_cap // 2

    lt0 = min(l_pad, 2048)

    def _step_bytes(nb_):
        return (nb_ * cg * hpwp_x * 2 * 2         # double-buffered bf16 input block
                + nb_ * fg * l_pad * 4 * 2        # double-buffered f32 output block
                + fg * ktot * 2 * 2               # weights
                + l_pad * 4                       # mask
                + ktot * nb_ * lt0 * 2            # stacked-K scratch
                + 2 * fg * 4 + (64 << 10))        # stats + slack

    nb = 1
    for cand in range(2, min(n, 8) + 1):
        if _step_bytes(cand) <= budget:
            nb = cand
    nchunks = -(-n // nb)
    n2 = nchunks * nb                             # batch padded with zero images

    # lane-tile width: bound the live f32 accumulator (Fg x nb*lt) and the scratch
    lt = min(l_pad, max(128, (2048 // nb) // 128 * 128))
    while fg * nb * lt * 4 > (256 << 10) and lt > 128:
        lt = max(128, (lt // 2) // 128 * 128)
    chunks = []
    off = 0
    while off < l_pad:
        cw = min(lt, l_pad - off)
        chunks.append((off, cw))
        off += cw
    chunks = tuple(chunks)

    # Cache conv outputs in VMEM across the two phases when they fit (avoids
    # re-reading x and recomputing the conv in the apply phase).
    ycache_bytes = n2 * fg * l_pad * 4
    cache_y = _step_bytes(nb) + ycache_bytes <= budget
    y_rows = n2 * fg if cache_y else 8
    y_cols = l_pad if cache_y else 128

    vmem_limit = None
    est = _step_bytes(nb) + (ycache_bytes if cache_y else 0)
    if est > (12 << 20):
        vmem_limit = int(min(vmem_cap * 3 // 4, est + (8 << 20)))

    # ---- cheap host-side prep (no im2col, no NHWC transpose) ----
    x_p = jnp.pad(x_nchw, ((0, n2 - n), (0, 0), (pad, pad), (pad, pad)))
    x_flat = x_p.reshape(n2, g, cg, hp * wp)
    x_flat = jnp.pad(x_flat, ((0, 0), (0, 0), (0, 0), (0, hpwp_x - hp * wp)))
    x_prep = x_flat.astype(jnp.bfloat16)

    # weight -> (G, Fg, kh*kw*Cg), contraction ordered (tap, channel) to match
    # the in-kernel stacking of shifted views.
    w_prep = (weight.reshape(g, fg, cg, kh, kw)
              .transpose(0, 1, 3, 4, 2)
              .reshape(g, fg, ktot)
              .astype(jnp.bfloat16))

    col = jnp.arange(l_pad, dtype=jnp.int32)
    mask = (jnp.logical_and(col < l_flat, (col % wp) < ow)
            .astype(jnp.float32).reshape(1, l_pad))
    gamma_p = gamma.reshape(g, fg, 1).astype(jnp.float32)
    beta_p = beta.reshape(g, fg, 1).astype(jnp.float32)

    kernel = functools.partial(
        _fused_kernel, nb=nb, cg=cg, fg=fg, kh=kh, kw=kw, wp=wp, chunks=chunks,
        count=count, eps=eps, cache_y=cache_y, nchunks=nchunks)

    if cache_y:
        # phase 1 never reads x: keep the block index frozen at the last phase-0
        # block so no re-DMA happens during the apply phase.
        x_map = lambda gi, p, ni: (ni * (1 - p) + (nchunks - 1) * p, gi, 0, 0)
    else:
        x_map = lambda gi, p, ni: (ni, gi, 0, 0)

    out = pl.pallas_call(
        kernel,
        out_shape=jax.ShapeDtypeStruct((n2, g, fg, l_pad), jnp.float32),
        grid_spec=pltpu.PrefetchScalarGridSpec(
            num_scalar_prefetch=0,
            grid=(g, 2, nchunks),     # (group, phase: stats/apply, batch chunk)
            in_specs=[
                pl.BlockSpec((nb, 1, cg, hpwp_x), x_map),
                pl.BlockSpec((1, fg, ktot), lambda gi, p, ni: (gi, 0, 0)),
                pl.BlockSpec((1, l_pad), lambda gi, p, ni: (0, 0)),
                pl.BlockSpec((1, fg, 1), lambda gi, p, ni: (gi, 0, 0)),
                pl.BlockSpec((1, fg, 1), lambda gi, p, ni: (gi, 0, 0)),
            ],
            # freeze the output block during phase 0 (p*ni == 0) so nothing is
            # written back to HBM until phase 1 has produced real data for it.
            out_specs=pl.BlockSpec((nb, 1, fg, l_pad),
                                   lambda gi, p, ni: (p * ni, gi, 0, 0)),
            scratch_shapes=[
                pltpu.VMEM((ktot, nb * lt), jnp.bfloat16),   # stacked-K RHS
                pltpu.VMEM((fg, 1), jnp.float32),            # sum
                pltpu.VMEM((fg, 1), jnp.float32),            # sum of squares
                pltpu.VMEM((y_rows, y_cols), jnp.float32),   # conv-output cache
            ],
        ),
        compiler_params=pltpu.CompilerParams(
            dimension_semantics=("parallel", "arbitrary", "arbitrary"),
            vmem_limit_bytes=vmem_limit),
    )(x_prep, w_prep, mask, gamma_p, beta_p)

    # (N2, G, Fg, Lpad) -> drop batch/lane padding -> (N, F, OH, Wp) -> drop the
    # per-row right-pad columns -> NCHW.  XLA fuses the slice/reshape chain.
    return out[:n, :, :, :l_flat].reshape(n, f, oh, wp)[:, :, :, :ow]


# ----------------------------- reference (JAX) ------------------------------ #

def reference(x, weight, gamma, beta, *, stride, groups, eps=1e-5):
    pad = (weight.shape[2] - 1) // 2
    y = lax.conv_general_dilated(
        x, weight, (stride, stride), [(pad, pad), (pad, pad)],
        feature_group_count=groups,
        dimension_numbers=("NCHW", "OIHW", "NCHW"))
    mean = y.mean(axis=(0, 2, 3), keepdims=True)
    var = y.var(axis=(0, 2, 3), keepdims=True)      # biased, train-mode BN
    z = (y - mean) / jnp.sqrt(var + eps)
    z = z * gamma[None, :, None, None] + beta[None, :, None, None]
    return z * jnp.clip(z + 3.0, 0.0, 6.0) / 6.0


# ---------------------------------- main ------------------------------------ #

if __name__ == "__main__":
    # ConvBNLayer(num_channels=4, filter_size=3, num_filters=8, stride=1, num_groups=1)
    N, C, H, W = 2, 4, 16, 16
    F, KH, KW = 8, 3, 3
    STRIDE, GROUPS = 1, 1
    CG = C // GROUPS

    key = jax.random.PRNGKey(0)
    k_w, k_x = jax.random.split(key, 2)

    # Conv2d weight: kaiming_normal_ (fan_in, gain sqrt(2)); bias=False.
    fan_in = CG * KH * KW
    weight = jax.random.normal(k_w, (F, CG, KH, KW), jnp.float32) * (2.0 / fan_in) ** 0.5
    # BatchNorm2d defaults (affine params untouched by _init_weights).
    gamma = jnp.ones((F,), jnp.float32)
    beta = jnp.zeros((F,), jnp.float32)

    x = jax.random.normal(k_x, (N, C, H, W), jnp.float32)

    out = conv_bn_hardswish(x, weight, gamma, beta, stride=STRIDE, groups=GROUPS)
    out = jax.block_until_ready(out)
    assert out.shape == (N, F, H, W)

    ref = jax.block_until_ready(
        reference(x, weight, gamma, beta, stride=STRIDE, groups=GROUPS))
    err = float(jnp.max(jnp.abs(out - ref)))
    if err > 3e-2:
        raise AssertionError(f"mismatch vs reference, max abs err = {err}")

    print("KERNEL_OK")
</pallas_src>

<mosaic_0001>
module attributes {stable_mosaic.version = 11 : i64} {
  func.func @_fused_kernel(%arg0: i32, %arg1: i32, %arg2: i32, %arg3: memref<2x1x4x422xbf16, #tpu.memory_space<vmem>>, %arg4: memref<1x8x36xbf16, #tpu.memory_space<vmem>>, %arg5: memref<1x384xf32, #tpu.memory_space<vmem>>, %arg6: memref<1x8x1xf32, #tpu.memory_space<vmem>>, %arg7: memref<1x8x1xf32, #tpu.memory_space<vmem>>, %arg8: memref<2x1x8x384xf32, #tpu.memory_space<vmem>>, %arg9: memref<36x768xbf16, #tpu.memory_space<vmem>>, %arg10: memref<8x1xf32, #tpu.memory_space<vmem>>, %arg11: memref<8x1xf32, #tpu.memory_space<vmem>>, %arg12: memref<16x384xf32, #tpu.memory_space<vmem>>) attributes {dimension_semantics = [#tpu.dimension_semantics<parallel>, #tpu.dimension_semantics<arbitrary>, #tpu.dimension_semantics<arbitrary>], iteration_bounds = array<i64: 1, 2, 1>, scalar_prefetch = 0 : i64, scratch_operands = 4 : i64, tpu.core_type = #tpu.core_type<tc>, window_params = [{transform_indices = @transform_0, window_bounds = array<i64: 2, 1, 4, 422>}, {transform_indices = @transform_1, window_bounds = array<i64: 1, 8, 36>}, {pipeline_mode = #tpu.pipeline_mode<synchronous>, transform_indices = @transform_2, window_bounds = array<i64: 1, 384>}, {transform_indices = @transform_3, window_bounds = array<i64: 1, 8, 1>}, {transform_indices = @transform_4, window_bounds = array<i64: 1, 8, 1>}, {transform_indices = @transform_5, window_bounds = array<i64: 2, 1, 8, 384>}]} {
    %c0_i32 = arith.constant 0 : i32
    %0 = arith.cmpi eq, %arg1, %c0_i32 : i32
    %c0_i32_0 = arith.constant 0 : i32
    %1 = arith.cmpi eq, %arg2, %c0_i32_0 : i32
    %2 = arith.andi %0, %1 : i1
    %3 = arith.extui %2 : i1 to i32
    %c0_i32_1 = arith.constant 0 : i32
    %4 = arith.cmpi ne, %3, %c0_i32_1 : i32
    scf.if %4 {
      %cst = arith.constant 0.000000e+00 : f32
      %11 = vector.broadcast %cst : f32 to vector<8x1xf32>
      %c0 = arith.constant 0 : index
      %c0_5 = arith.constant 0 : index
      %12 = vector.load %arg10[%c0, %c0_5] : memref<8x1xf32, #tpu.memory_space<vmem>>, vector<8x1xf32>
      tpu.vector_store %arg10[%c0, %c0_5], %11 {strides = array<i32>} : memref<8x1xf32, #tpu.memory_space<vmem>>, vector<8x1xf32>,
      %cst_6 = arith.constant 0.000000e+00 : f32
      %13 = vector.broadcast %cst_6 : f32 to vector<8x1xf32>
      %c0_7 = arith.constant 0 : index
      %c0_8 = arith.constant 0 : index
      %14 = vector.load %arg11[%c0_7, %c0_8] : memref<8x1xf32, #tpu.memory_space<vmem>>, vector<8x1xf32>
      tpu.vector_store %arg11[%c0_7, %c0_8], %13 {strides = array<i32>} : memref<8x1xf32, #tpu.memory_space<vmem>>, vector<8x1xf32>,
    } else {
    }
    %c0_i32_2 = arith.constant 0 : i32
    %5 = arith.cmpi eq, %arg1, %c0_i32_2 : i32
    %6 = arith.extui %5 : i1 to i32
    %c0_i32_3 = arith.constant 0 : i32
    %7 = arith.cmpi ne, %6, %c0_i32_3 : i32
    scf.if %7 {
      %cst = arith.constant 0.000000e+00 : f32
      %11 = vector.broadcast %cst : f32 to vector<8x1xf32>
      %cst_5 = arith.constant 0.000000e+00 : f32
      %12 = vector.broadcast %cst_5 : f32 to vector<8x1xf32>
      %c0 = arith.constant 0 : index
      %c0_6 = arith.constant 0 : index
      %c0_7 = arith.constant 0 : index
      %c0_8 = arith.constant 0 : index
      %13 = vector.load %arg3[%c0, %c0_6, %c0_7, %c0_8] : memref<2x1x4x422xbf16, #tpu.memory_space<vmem>>, vector<1x1x4x384xbf16>
      %14 = vector.shape_cast %13 : vector<1x1x4x384xbf16> to vector<4x384xbf16>
      %c0_9 = arith.constant 0 : index
      %c0_10 = arith.constant 0 : index
      %15 = vector.load %arg9[%c0_9, %c0_10] : memref<36x768xbf16, #tpu.memory_space<vmem>>, vector<4x384xbf16>
      tpu.vector_store %arg9[%c0_9, %c0_10], %14 {strides = array<i32>} : memref<36x768xbf16, #tpu.memory_space<vmem>>, vector<4x384xbf16>,
      %c0_11 = arith.constant 0 : index
      %c0_12 = arith.constant 0 : index
      %c0_13 = arith.constant 0 : index
      %c1 = arith.constant 1 : index
      %16 = vector.load %arg3[%c0_11, %c0_12, %c0_13, %c1] : memref<2x1x4x422xbf16, #tpu.memory_space<vmem>>, vector<1x1x4x384xbf16>
      %17 = vector.shape_cast %16 : vector<1x1x4x384xbf16> to vector<4x384xbf16>
      %c4 = arith.constant 4 : index
      %c0_14 = arith.constant 0 : index
      %18 = vector.load %arg9[%c4, %c0_14] : memref<36x768xbf16, #tpu.memory_space<vmem>>, vector<4x384xbf16>
      tpu.vector_store %arg9[%c4, %c0_14], %17 {strides = array<i32>} : memref<36x768xbf16, #tpu.memory_space<vmem>>, vector<4x384xbf16>,
      %c0_15 = arith.constant 0 : index
      %c0_16 = arith.constant 0 : index
      %c0_17 = arith.constant 0 : index
      %c2 = arith.constant 2 : index
      %19 = vector.load %arg3[%c0_15, %c0_16, %c0_17, %c2] : memref<2x1x4x422xbf16, #tpu.memory_space<vmem>>, vector<1x1x4x384xbf16>
      %20 = vector.shape_cast %19 : vector<1x1x4x384xbf16> to vector<4x384xbf16>
      %c8 = arith.constant 8 : index
      %c0_18 = arith.constant 0 : index
      %21 = vector.load %arg9[%c8, %c0_18] : memref<36x768xbf16, #tpu.memory_space<vmem>>, vector<4x384xbf16>
      tpu.vector_store %arg9[%c8, %c0_18], %20 {strides = array<i32>} : memref<36x768xbf16, #tpu.memory_space<vmem>>, vector<4x384xbf16>,
      %c0_19 = arith.constant 0 : index
      %c0_20 = arith.constant 0 : index
      %c0_21 = arith.constant 0 : index
      %c18 = arith.constant 18 : index
      %22 = vector.load %arg3[%c0_19, %c0_20, %c0_21, %c18] : memref<2x1x4x422xbf16, #tpu.memory_space<vmem>>, vector<1x1x4x384xbf16>
      %23 = vector.shape_cast %22 : vector<1x1x4x384xbf16> to vector<4x384xbf16>
      %c12 = arith.constant 12 : index
      %c0_22 = arith.constant 0 : index
      %24 = vector.load %arg9[%c12, %c0_22] : memref<36x768xbf16, #tpu.memory_space<vmem>>, vector<4x384xbf16>
      tpu.vector_store %arg9[%c12, %c0_22], %23 {strides = array<i32>} : memref<36x768xbf16, #tpu.memory_space<vmem>>, vector<4x384xbf16>,
      %c0_23 = arith.constant 0 : index
      %c0_24 = arith.constant 0 : index
      %c0_25 = arith.constant 0 : index
      %c19 = arith.constant 19 : index
      %25 = vector.load %arg3[%c0_23, %c0_24, %c0_25, %c19] : memref<2x1x4x422xbf16, #tpu.memory_space<vmem>>, vector<1x1x4x384xbf16>
      %26 = vector.shape_cast %25 : vector<1x1x4x384xbf16> to vector<4x384xbf16>
      %c16 = arith.constant 16 : index
      %c0_26 = arith.constant 0 : index
      %27 = vector.load %arg9[%c16, %c0_26] : memref<36x768xbf16, #tpu.memory_space<vmem>>, vector<4x384xbf16>
      tpu.vector_store %arg9[%c16, %c0_26], %26 {strides = array<i32>} : memref<36x768xbf16, #tpu.memory_space<vmem>>, vector<4x384xbf16>,
      %c0_27 = arith.constant 0 : index
      %c0_28 = arith.constant 0 : index
      %c0_29 = arith.constant 0 : index
      %c20 = arith.constant 20 : index
      %28 = vector.load %arg3[%c0_27, %c0_28, %c0_29, %c20] : memref<2x1x4x422xbf16, #tpu.memory_space<vmem>>, vector<1x1x4x384xbf16>
      %29 = vector.shape_cast %28 : vector<1x1x4x384xbf16> to vector<4x384xbf16>
      %c20_30 = arith.constant 20 : index
      %c0_31 = arith.constant 0 : index
      %30 = vector.load %arg9[%c20_30, %c0_31] : memref<36x768xbf16, #tpu.memory_space<vmem>>, vector<4x384xbf16>
      tpu.vector_store %arg9[%c20_30, %c0_31], %29 {strides = array<i32>} : memref<36x768xbf16, #tpu.memory_space<vmem>>, vector<4x384xbf16>,
      %c0_32 = arith.constant 0 : index
      %c0_33 = arith.constant 0 : index
      %c0_34 = arith.constant 0 : index
      %c36 = arith.constant 36 : index
      %31 = vector.load %arg3[%c0_32, %c0_33, %c0_34, %c36] : memref<2x1x4x422xbf16, #tpu.memory_space<vmem>>, vector<1x1x4x384xbf16>
      %32 = vector.shape_cast %31 : vector<1x1x4x384xbf16> to vector<4x384xbf16>
      %c24 = arith.constant 24 : index
      %c0_35 = arith.constant 0 : index
      %33 = vector.load %arg9[%c24, %c0_35] : memref<36x768xbf16, #tpu.memory_space<vmem>>, vector<4x384xbf16>
      tpu.vector_store %arg9[%c24, %c0_35], %32 {strides = array<i32>} : memref<36x768xbf16, #tpu.memory_space<vmem>>, vector<4x384xbf16>,
      %c0_36 = arith.constant 0 : index
      %c0_37 = arith.constant 0 : index
      %c0_38 = arith.constant 0 : index
      %c37 = arith.constant 37 : index
      %34 = vector.load %arg3[%c0_36, %c0_37, %c0_38, %c37] : memref<2x1x4x422xbf16, #tpu.memory_space<vmem>>, vector<1x1x4x384xbf16>
      %35 = vector.shape_cast %34 : vector<1x1x4x384xbf16> to vector<4x384xbf16>
      %c28 = arith.constant 28 : index
      %c0_39 = arith.constant 0 : index
      %36 = vector.load %arg9[%c28, %c0_39] : memref<36x768xbf16, #tpu.memory_space<vmem>>, vector<4x384xbf16>
      tpu.vector_store %arg9[%c28, %c0_39], %35 {strides = array<i32>} : memref<36x768xbf16, #tpu.memory_space<vmem>>, vector<4x384xbf16>,
      %c0_40 = arith.constant 0 : index
      %c0_41 = arith.constant 0 : index
      %c0_42 = arith.constant 0 : index
      %c38 = arith.constant 38 : index
      %37 = vector.load %arg3[%c0_40, %c0_41, %c0_42, %c38] : memref<2x1x4x422xbf16, #tpu.memory_space<vmem>>, vector<1x1x4x384xbf16>
      %38 = vector.shape_cast %37 : vector<1x1x4x384xbf16> to vector<4x384xbf16>
      %c32 = arith.constant 32 : index
      %c0_43 = arith.constant 0 : index
      %39 = vector.load %arg9[%c32, %c0_43] : memref<36x768xbf16, #tpu.memory_space<vmem>>, vector<4x384xbf16>
      tpu.vector_store %arg9[%c32, %c0_43], %38 {strides = array<i32>} : memref<36x768xbf16, #tpu.memory_space<vmem>>, vector<4x384xbf16>,
      %c1_44 = arith.constant 1 : index
      %c0_45 = arith.constant 0 : index
      %c0_46 = arith.constant 0 : index
      %c0_47 = arith.constant 0 : index
      %40 = vector.load %arg3[%c1_44, %c0_45, %c0_46, %c0_47] : memref<2x1x4x422xbf16, #tpu.memory_space<vmem>>, vector<1x1x4x384xbf16>
      %41 = vector.shape_cast %40 : vector<1x1x4x384xbf16> to vector<4x384xbf16>
      %c0_48 = arith.constant 0 : index
      %c384 = arith.constant 384 : index
      %42 = vector.load %arg9[%c0_48, %c384] : memref<36x768xbf16, #tpu.memory_space<vmem>>, vector<4x384xbf16>
      tpu.vector_store %arg9[%c0_48, %c384], %41 {strides = array<i32>} : memref<36x768xbf16, #tpu.memory_space<vmem>>, vector<4x384xbf16>,
      %c1_49 = arith.constant 1 : index
      %c0_50 = arith.constant 0 : index
      %c0_51 = arith.constant 0 : index
      %c1_52 = arith.constant 1 : index
      %43 = vector.load %arg3[%c1_49, %c0_50, %c0_51, %c1_52] : memref<2x1x4x422xbf16, #tpu.memory_space<vmem>>, vector<1x1x4x384xbf16>
      %44 = vector.shape_cast %43 : vector<1x1x4x384xbf16> to vector<4x384xbf16>
      %c4_53 = arith.constant 4 : index
      %c384_54 = arith.constant 384 : index
      %45 = vector.load %arg9[%c4_53, %c384_54] : memref<36x768xbf16, #tpu.memory_space<vmem>>, vector<4x384xbf16>
      tpu.vector_store %arg9[%c4_53, %c384_54], %44 {strides = array<i32>} : memref<36x768xbf16, #tpu.memory_space<vmem>>, vector<4x384xbf16>,
      %c1_55 = arith.constant 1 : index
      %c0_56 = arith.constant 0 : index
      %c0_57 = arith.constant 0 : index
      %c2_58 = arith.constant 2 : index
      %46 = vector.load %arg3[%c1_55, %c0_56, %c0_57, %c2_58] : memref<2x1x4x422xbf16, #tpu.memory_space<vmem>>, vector<1x1x4x384xbf16>
      %47 = vector.shape_cast %46 : vector<1x1x4x384xbf16> to vector<4x384xbf16>
      %c8_59 = arith.constant 8 : index
      %c384_60 = arith.constant 384 : index
      %48 = vector.load %arg9[%c8_59, %c384_60] : memref<36x768xbf16, #tpu.memory_space<vmem>>, vector<4x384xbf16>
      tpu.vector_store %arg9[%c8_59, %c384_60], %47 {strides = array<i32>} : memref<36x768xbf16, #tpu.memory_space<vmem>>, vector<4x384xbf16>,
      %c1_61 = arith.constant 1 : index
      %c0_62 = arith.constant 0 : index
      %c0_63 = arith.constant 0 : index
      %c18_64 = arith.constant 18 : index
      %49 = vector.load %arg3[%c1_61, %c0_62, %c0_63, %c18_64] : memref<2x1x4x422xbf16, #tpu.memory_space<vmem>>, vector<1x1x4x384xbf16>
      %50 = vector.shape_cast %49 : vector<1x1x4x384xbf16> to vector<4x384xbf16>
      %c12_65 = arith.constant 12 : index
      %c384_66 = arith.constant 384 : index
      %51 = vector.load %arg9[%c12_65, %c384_66] : memref<36x768xbf16, #tpu.memory_space<vmem>>, vector<4x384xbf16>
      tpu.vector_store %arg9[%c12_65, %c384_66], %50 {strides = array<i32>} : memref<36x768xbf16, #tpu.memory_space<vmem>>, vector<4x384xbf16>,
      %c1_67 = arith.constant 1 : index
      %c0_68 = arith.constant 0 : index
      %c0_69 = arith.constant 0 : index
      %c19_70 = arith.constant 19 : index
      %52 = vector.load %arg3[%c1_67, %c0_68, %c0_69, %c19_70] : memref<2x1x4x422xbf16, #tpu.memory_space<vmem>>, vector<1x1x4x384xbf16>
      %53 = vector.shape_cast %52 : vector<1x1x4x384xbf16> to vector<4x384xbf16>
      %c16_71 = arith.constant 16 : index
      %c384_72 = arith.constant 384 : index
      %54 = vector.load %arg9[%c16_71, %c384_72] : memref<36x768xbf16, #tpu.memory_space<vmem>>, vector<4x384xbf16>
      tpu.vector_store %arg9[%c16_71, %c384_72], %53 {strides = array<i32>} : memref<36x768xbf16, #tpu.memory_space<vmem>>, vector<4x384xbf16>,
      %c1_73 = arith.constant 1 : index
      %c0_74 = arith.constant 0 : index
      %c0_75 = arith.constant 0 : index
      %c20_76 = arith.constant 20 : index
      %55 = vector.load %arg3[%c1_73, %c0_74, %c0_75, %c20_76] : memref<2x1x4x422xbf16, #tpu.memory_space<vmem>>, vector<1x1x4x384xbf16>
      %56 = vector.shape_cast %55 : vector<1x1x4x384xbf16> to vector<4x384xbf16>
      %c20_77 = arith.constant 20 : index
      %c384_78 = arith.constant 384 : index
      %57 = vector.load %arg9[%c20_77, %c384_78] : memref<36x768xbf16, #tpu.memory_space<vmem>>, vector<4x384xbf16>
      tpu.vector_store %arg9[%c20_77, %c384_78], %56 {strides = array<i32>} : memref<36x768xbf16, #tpu.memory_space<vmem>>, vector<4x384xbf16>,
      %c1_79 = arith.constant 1 : index
      %c0_80 = arith.constant 0 : index
      %c0_81 = arith.constant 0 : index
      %c36_82 = arith.constant 36 : index
      %58 = vector.load %arg3[%c1_79, %c0_80, %c0_81, %c36_82] : memref<2x1x4x422xbf16, #tpu.memory_space<vmem>>, vector<1x1x4x384xbf16>
      %59 = vector.shape_cast %58 : vector<1x1x4x384xbf16> to vector<4x384xbf16>
      %c24_83 = arith.constant 24 : index
      %c384_84 = arith.constant 384 : index
      %60 = vector.load %arg9[%c24_83, %c384_84] : memref<36x768xbf16, #tpu.memory_space<vmem>>, vector<4x384xbf16>
      tpu.vector_store %arg9[%c24_83, %c384_84], %59 {strides = array<i32>} : memref<36x768xbf16, #tpu.memory_space<vmem>>, vector<4x384xbf16>,
      %c1_85 = arith.constant 1 : index
      %c0_86 = arith.constant 0 : index
      %c0_87 = arith.constant 0 : index
      %c37_88 = arith.constant 37 : index
      %61 = vector.load %arg3[%c1_85, %c0_86, %c0_87, %c37_88] : memref<2x1x4x422xbf16, #tpu.memory_space<vmem>>, vector<1x1x4x384xbf16>
      %62 = vector.shape_cast %61 : vector<1x1x4x384xbf16> to vector<4x384xbf16>
      %c28_89 = arith.constant 28 : index
      %c384_90 = arith.constant 384 : index
      %63 = vector.load %arg9[%c28_89, %c384_90] : memref<36x768xbf16, #tpu.memory_space<vmem>>, vector<4x384xbf16>
      tpu.vector_store %arg9[%c28_89, %c384_90], %62 {strides = array<i32>} : memref<36x768xbf16, #tpu.memory_space<vmem>>, vector<4x384xbf16>,
      %c1_91 = arith.constant 1 : index
      %c0_92 = arith.constant 0 : index
      %c0_93 = arith.constant 0 : index
      %c38_94 = arith.constant 38 : index
      %64 = vector.load %arg3[%c1_91, %c0_92, %c0_93, %c38_94] : memref<2x1x4x422xbf16, #tpu.memory_space<vmem>>, vector<1x1x4x384xbf16>
      %65 = vector.shape_cast %64 : vector<1x1x4x384xbf16> to vector<4x384xbf16>
      %c32_95 = arith.constant 32 : index
      %c384_96 = arith.constant 384 : index
      %66 = vector.load %arg9[%c32_95, %c384_96] : memref<36x768xbf16, #tpu.memory_space<vmem>>, vector<4x384xbf16>
      tpu.vector_store %arg9[%c32_95, %c384_96], %65 {strides = array<i32>} : memref<36x768xbf16, #tpu.memory_space<vmem>>, vector<4x384xbf16>,
      %c0_97 = arith.constant 0 : index
      %c0_98 = arith.constant 0 : index
      %c0_99 = arith.constant 0 : index
      %67 = vector.load %arg4[%c0_97, %c0_98, %c0_99] : memref<1x8x36xbf16, #tpu.memory_space<vmem>>, vector<1x8x36xbf16>
      %68 = vector.shape_cast %67 : vector<1x8x36xbf16> to vector<8x36xbf16>
      %c0_100 = arith.constant 0 : index
      %c0_101 = arith.constant 0 : index
      %69 = vector.load %arg9[%c0_100, %c0_101] : memref<36x768xbf16, #tpu.memory_space<vmem>>, vector<36x768xbf16>
      %cst_102 = arith.constant dense<0.000000e+00> : vector<8x768xf32>
      %70 = tpu.matmul %68, %69, %cst_102 {dimension_numbers = #tpu.dot_dimension_numbers<[1], [0], [0], [1], [0, 0, 1, 1], [], []>} : vector<8x36xbf16>, vector<36x768xbf16>, vector<8x768xf32> -> vector<8x768xf32>
      %c0_103 = arith.constant 0 : index
      %c0_104 = arith.constant 0 : index
      %71 = vector.load %arg5[%c0_103, %c0_104] : memref<1x384xf32, #tpu.memory_space<vmem>>, vector<1x384xf32>
      %72 = vector.extract_strided_slice %70 {offsets = [0, 0], sizes = [8, 384], strides = [1, 1]} : vector<8x768xf32> to vector<8x384xf32>
      %73 = vector.broadcast %71 : vector<1x384xf32> to vector<8x384xf32>
      %74 = arith.mulf %72, %73 : vector<8x384xf32>
      %cst_105 = arith.constant dense<0.000000e+00> : vector<8xf32>
      %75 = vector.multi_reduction <add>, %74, %cst_105 [1] : vector<8x384xf32> to vector<8xf32>
      %76 = vector.shape_cast %75 : vector<8xf32> to vector<8x1xf32>
      %77 = arith.addf %11, %76 : vector<8x1xf32>
      %78 = arith.mulf %74, %72 : vector<8x384xf32>
      %cst_106 = arith.constant dense<0.000000e+00> : vector<8xf32>
      %79 = vector.multi_reduction <add>, %78, %cst_106 [1] : vector<8x384xf32> to vector<8xf32>
      %80 = vector.shape_cast %79 : vector<8xf32> to vector<8x1xf32>
      %81 = arith.addf %12, %80 : vector<8x1xf32>
      %c0_107 = arith.constant 0 : index
      %c0_108 = arith.constant 0 : index
      %82 = vector.load %arg12[%c0_107, %c0_108] : memref<16x384xf32, #tpu.memory_space<vmem>>, vector<8x384xf32>
      tpu.vector_store %arg12[%c0_107, %c0_108], %72 {strides = array<i32>} : memref<16x384xf32, #tpu.memory_space<vmem>>, vector<8x384xf32>,
      %83 = vector.extract_strided_slice %70 {offsets = [0, 384], sizes = [8, 384], strides = [1, 1]} : vector<8x768xf32> to vector<8x384xf32>
      %84 = vector.broadcast %71 : vector<1x384xf32> to vector<8x384xf32>
      %85 = arith.mulf %83, %84 : vector<8x384xf32>
      %cst_109 = arith.constant dense<0.000000e+00> : vector<8xf32>
      %86 = vector.multi_reduction <add>, %85, %cst_109 [1] : vector<8x384xf32> to vector<8xf32>
      %87 = vector.shape_cast %86 : vector<8xf32> to vector<8x1xf32>
      %88 = arith.addf %77, %87 : vector<8x1xf32>
      %89 = arith.mulf %85, %83 : vector<8x384xf32>
      %cst_110 = arith.constant dense<0.000000e+00> : vector<8xf32>
      %90 = vector.multi_reduction <add>, %89, %cst_110 [1] : vector<8x384xf32> to vector<8xf32>
      %91 = vector.shape_cast %90 : vector<8xf32> to vector<8x1xf32>
      %92 = arith.addf %81, %91 : vector<8x1xf32>
      %c8_111 = arith.constant 8 : index
      %c0_112 = arith.constant 0 : index
      %93 = vector.load %arg12[%c8_111, %c0_112] : memref<16x384xf32, #tpu.memory_space<vmem>>, vector<8x384xf32>
      tpu.vector_store %arg12[%c8_111, %c0_112], %83 {strides = array<i32>} : memref<16x384xf32, #tpu.memory_space<vmem>>, vector<8x384xf32>,
      %c0_113 = arith.constant 0 : index
      %c0_114 = arith.constant 0 : index
      %94 = vector.load %arg10[%c0_113, %c0_114] : memref<8x1xf32, #tpu.memory_space<vmem>>, vector<8x1xf32>
      %95 = arith.addf %94, %88 : vector<8x1xf32>
      %c0_115 = arith.constant 0 : index
      %c0_116 = arith.constant 0 : index
      %96 = vector.load %arg10[%c0_115, %c0_116] : memref<8x1xf32, #tpu.memory_space<vmem>>, vector<8x1xf32>
      tpu.vector_store %arg10[%c0_115, %c0_116], %95 {strides = array<i32>} : memref<8x1xf32, #tpu.memory_space<vmem>>, vector<8x1xf32>,
      %c0_117 = arith.constant 0 : index
      %c0_118 = arith.constant 0 : index
      %97 = vector.load %arg11[%c0_117, %c0_118] : memref<8x1xf32, #tpu.memory_space<vmem>>, vector<8x1xf32>
      %98 = arith.addf %97, %92 : vector<8x1xf32>
      %c0_119 = arith.constant 0 : index
      %c0_120 = arith.constant 0 : index
      %99 = vector.load %arg11[%c0_119, %c0_120] : memref<8x1xf32, #tpu.memory_space<vmem>>, vector<8x1xf32>
      tpu.vector_store %arg11[%c0_119, %c0_120], %98 {strides = array<i32>} : memref<8x1xf32, #tpu.memory_space<vmem>>, vector<8x1xf32>,
    } else {
    }
    %c1_i32 = arith.constant 1 : i32
    %8 = arith.cmpi eq, %arg1, %c1_i32 : i32
    %9 = arith.extui %8 : i1 to i32
    %c0_i32_4 = arith.constant 0 : i32
    %10 = arith.cmpi ne, %9, %c0_i32_4 : i32
    scf.if %10 {
      %c0 = arith.constant 0 : index
      %c0_5 = arith.constant 0 : index
      %11 = vector.load %arg10[%c0, %c0_5] : memref<8x1xf32, #tpu.memory_space<vmem>>, vector<8x1xf32>
      %cst = arith.constant 0.001953125 : f32
      %12 = vector.broadcast %cst : f32 to vector<8x1xf32>
      %13 = arith.mulf %11, %12 : vector<8x1xf32>
      %c0_6 = arith.constant 0 : index
      %c0_7 = arith.constant 0 : index
      %14 = vector.load %arg11[%c0_6, %c0_7] : memref<8x1xf32, #tpu.memory_space<vmem>>, vector<8x1xf32>
      %cst_8 = arith.constant 0.001953125 : f32
      %15 = vector.broadcast %cst_8 : f32 to vector<8x1xf32>
      %16 = arith.mulf %14, %15 : vector<8x1xf32>
      %17 = arith.mulf %13, %13 : vector<8x1xf32>
      %18 = arith.subf %16, %17 : vector<8x1xf32>
      %cst_9 = arith.constant 0.000000e+00 : f32
      %19 = vector.broadcast %cst_9 : f32 to vector<8x1xf32>
      %20 = arith.maximumf %18, %19 : vector<8x1xf32>
      %c0_10 = arith.constant 0 : index
      %c0_11 = arith.constant 0 : index
      %c0_12 = arith.constant 0 : index
      %21 = vector.load %arg6[%c0_10, %c0_11, %c0_12] : memref<1x8x1xf32, #tpu.memory_space<vmem>>, vector<1x8x1xf32>
      %22 = vector.shape_cast %21 : vector<1x8x1xf32> to vector<8x1xf32>
      %cst_13 = arith.constant 9.99999974E-6 : f32
      %23 = vector.broadcast %cst_13 : f32 to vector<8x1xf32>
      %24 = arith.addf %20, %23 : vector<8x1xf32>
      %25 = math.rsqrt %24 : vector<8x1xf32>
      %26 = arith.mulf %22, %25 : vector<8x1xf32>
      %c0_14 = arith.constant 0 : index
      %c0_15 = arith.constant 0 : index
      %c0_16 = arith.constant 0 : index
      %27 = vector.load %arg7[%c0_14, %c0_15, %c0_16] : memref<1x8x1xf32, #tpu.memory_space<vmem>>, vector<1x8x1xf32>
      %28 = vector.shape_cast %27 : vector<1x8x1xf32> to vector<8x1xf32>
      %29 = arith.mulf %13, %26 : vector<8x1xf32>
      %30 = arith.subf %28, %29 : vector<8x1xf32>
      %c0_17 = arith.constant 0 : index
      %c0_18 = arith.constant 0 : index
      %31 = vector.load %arg12[%c0_17, %c0_18] : memref<16x384xf32, #tpu.memory_space<vmem>>, vector<8x384xf32>
      %32 = vector.broadcast %26 : vector<8x1xf32> to vector<8x384xf32>
      %33 = arith.mulf %31, %32 : vector<8x384xf32>
      %34 = vector.broadcast %30 : vector<8x1xf32> to vector<8x384xf32>
      %35 = arith.addf %33, %34 : vector<8x384xf32>
      %cst_19 = arith.constant 3.000000e+00 : f32
      %36 = vector.broadcast %cst_19 : f32 to vector<8x384xf32>
      %37 = arith.addf %35, %36 : vector<8x384xf32>
      %cst_20 = arith.constant 0.000000e+00 : f32
      %cst_21 = arith.constant 6.000000e+00 : f32
      %38 = vector.broadcast %cst_20 : f32 to vector<8x384xf32>
      %39 = arith.maximumf %38, %37 : vector<8x384xf32>
      %40 = vector.broadcast %cst_21 : f32 to vector<8x384xf32>
      %41 = arith.minimumf %40, %39 : vector<8x384xf32>
      %42 = arith.mulf %35, %41 : vector<8x384xf32>
      %cst_22 = arith.constant 0.166666672 : f32
      %43 = vector.broadcast %cst_22 : f32 to vector<8x384xf32>
      %44 = arith.mulf %42, %43 : vector<8x384xf32>
      %c0_23 = arith.constant 0 : index
      %c0_24 = arith.constant 0 : index
      %c0_25 = arith.constant 0 : index
      %c0_26 = arith.constant 0 : index
      %45 = vector.load %arg8[%c0_23, %c0_24, %c0_25, %c0_26] : memref<2x1x8x384xf32, #tpu.memory_space<vmem>>, vector<1x1x8x384xf32>
      %46 = vector.shape_cast %45 : vector<1x1x8x384xf32> to vector<8x384xf32>
      %47 = vector.shape_cast %44 : vector<8x384xf32> to vector<1x1x8x384xf32>
      tpu.vector_store %arg8[%c0_23, %c0_24, %c0_25, %c0_26], %47 {strides = array<i32>} : memref<2x1x8x384xf32, #tpu.memory_space<vmem>>, vector<1x1x8x384xf32>,
      %c8 = arith.constant 8 : index
      %c0_27 = arith.constant 0 : index
      %48 = vector.load %arg12[%c8, %c0_27] : memref<16x384xf32, #tpu.memory_space<vmem>>, vector<8x384xf32>
      %49 = vector.broadcast %26 : vector<8x1xf32> to vector<8x384xf32>
      %50 = arith.mulf %48, %49 : vector<8x384xf32>
      %51 = vector.broadcast %30 : vector<8x1xf32> to vector<8x384xf32>
      %52 = arith.addf %50, %51 : vector<8x384xf32>
      %cst_28 = arith.constant 3.000000e+00 : f32
      %53 = vector.broadcast %cst_28 : f32 to vector<8x384xf32>
      %54 = arith.addf %52, %53 : vector<8x384xf32>
      %cst_29 = arith.constant 0.000000e+00 : f32
      %cst_30 = arith.constant 6.000000e+00 : f32
      %55 = vector.broadcast %cst_29 : f32 to vector<8x384xf32>
      %56 = arith.maximumf %55, %54 : vector<8x384xf32>
      %57 = vector.broadcast %cst_30 : f32 to vector<8x384xf32>
      %58 = arith.minimumf %57, %56 : vector<8x384xf32>
      %59 = arith.mulf %52, %58 : vector<8x384xf32>
      %cst_31 = arith.constant 0.166666672 : f32
      %60 = vector.broadcast %cst_31 : f32 to vector<8x384xf32>
      %61 = arith.mulf %59, %60 : vector<8x384xf32>
      %c1 = arith.constant 1 : index
      %c0_32 = arith.constant 0 : index
      %c0_33 = arith.constant 0 : index
      %c0_34 = arith.constant 0 : index
      %62 = vector.load %arg8[%c1, %c0_32, %c0_33, %c0_34] : memref<2x1x8x384xf32, #tpu.memory_space<vmem>>, vector<1x1x8x384xf32>
      %63 = vector.shape_cast %62 : vector<1x1x8x384xf32> to vector<8x384xf32>
      %64 = vector.shape_cast %61 : vector<8x384xf32> to vector<1x1x8x384xf32>
      tpu.vector_store %arg8[%c1, %c0_32, %c0_33, %c0_34], %64 {strides = array<i32>} : memref<2x1x8x384xf32, #tpu.memory_space<vmem>>, vector<1x1x8x384xf32>,
    } else {
    }
    return
  }
  func.func @transform_0(%arg0: i32, %arg1: i32, %arg2: i32) -> (i32, i32, i32, i32) {
    %c1_i32 = arith.constant 1 : i32
    %0 = arith.subi %c1_i32, %arg1 : i32
    %1 = arith.muli %arg2, %0 : i32
    %c0_i32 = arith.constant 0 : i32
    %2 = arith.muli %c0_i32, %arg1 : i32
    %3 = arith.addi %1, %2 : i32
    %c0_i32_0 = arith.constant 0 : i32
    %c0_i32_1 = arith.constant 0 : i32
    %c0_i32_2 = arith.constant 0 : i32
    return %3, %arg0, %c0_i32_0, %c0_i32_1 : i32, i32, i32, i32
  }
  func.func @transform_1(%arg0: i32, %arg1: i32, %arg2: i32) -> (i32, i32, i32) {
    %c0_i32 = arith.constant 0 : i32
    %c0_i32_0 = arith.constant 0 : i32
    %c0_i32_1 = arith.constant 0 : i32
    return %arg0, %c0_i32, %c0_i32_0 : i32, i32, i32
  }
  func.func @transform_2(%arg0: i32, %arg1: i32, %arg2: i32) -> (i32, i32) {
    %c0_i32 = arith.constant 0 : i32
    %c0_i32_0 = arith.constant 0 : i32
    %c0_i32_1 = arith.constant 0 : i32
    return %c0_i32, %c0_i32_0 : i32, i32
  }
  func.func @transform_3(%arg0: i32, %arg1: i32, %arg2: i32) -> (i32, i32, i32) {
    %c0_i32 = arith.constant 0 : i32
    %c0_i32_0 = arith.constant 0 : i32
    %c0_i32_1 = arith.constant 0 : i32
    return %arg0, %c0_i32, %c0_i32_0 : i32, i32, i32
  }
  func.func @transform_4(%arg0: i32, %arg1: i32, %arg2: i32) -> (i32, i32, i32) {
    %c0_i32 = arith.constant 0 : i32
    %c0_i32_0 = arith.constant 0 : i32
    %c0_i32_1 = arith.constant 0 : i32
    return %arg0, %c0_i32, %c0_i32_0 : i32, i32, i32
  }
  func.func @transform_5(%arg0: i32, %arg1: i32, %arg2: i32) -> (i32, i32, i32, i32) {
    %0 = arith.muli %arg1, %arg2 : i32
    %c0_i32 = arith.constant 0 : i32
    %c0_i32_0 = arith.constant 0 : i32
    %c0_i32_1 = arith.constant 0 : i32
    return %0, %arg0, %c0_i32, %c0_i32_0 : i32, i32, i32, i32
  }
}

</mosaic_0001>

<llo_original>
// kernel: conv_bn_hardswish.1
$region0: #{conv_bn_hardswish.1}
  #allocation0 [shape = 'u32[]', space=smem, size = 0x4, offset = 0x4, fixed_abs, tag = 'smem constant byte address 0x4 - core index']
  #allocation1 [shape = 'u32[144,128]{1,0:T(1,128)}', space=vmem, size = 0x12000, scoped, tag = 'internal scratch']
  #allocation2 [shape = 'bf16[36,768]{1,0:T(8,128)(2,1)}', space=vmem, size = 0xf000, scoped, tag = 'scratch operand']
  #allocation3 [shape = 'f32[8,1]{1,0:T(8,128)}', space=vmem, size = 0x1000, scoped, tag = 'scratch operand']
  #allocation4 [shape = 'f32[8,1]{1,0:T(8,128)}', space=vmem, size = 0x1000, scoped, tag = 'scratch operand']
  #allocation5 [shape = 'f32[16,384]{1,0:T(8,128)}', space=vmem, size = 0x6000, scoped, tag = 'scratch operand']
  %s0 = inlined_call_operand.vmem [shape: bf16[2,1,4,422], index: 0, kind: input, shape index: {}]
  %s1 = inlined_call_operand.vmem [shape: bf16[1,8,36], index: 1, kind: input, shape index: {}]
  %s2 = inlined_call_operand.vmem [shape: f32[1,384], index: 2, kind: input, shape index: {}]
  %s3 = inlined_call_operand.vmem [shape: f32[1,8,1], index: 3, kind: input, shape index: {}]
  %s4 = inlined_call_operand.vmem [shape: f32[1,8,1], index: 4, kind: input, shape index: {}]
  %s5 = inlined_call_operand.vmem [shape: f32[2,1,8,384], index: 5, kind: output, shape index: {}]
  %s6 = sld [smem:[#allocation0]]
  $region65: #{conv_bn_hardswish.1} parent=0
    _
  %s8 = ssub.s32 1, %s6
  %s9 = scalar_select 0, %s8, %s6
  loop: start=0, step=1, limit=4
  $region2: #{conv_bn_hardswish.1} parent=0 // loop_pre_header
    _
  $region3: #{conv_bn_hardswish.1} parent=0 // loop_header
    %s11 = sphi 0, %s15
    %p12 = scmp.ge.s32.totalorder %s11, 4
    %s18 = sphi 0, %s37
    %s19 = sphi 0, %s33
    %s20 = sphi 0, %s29
    %s21 = sphi 0, %s18
    %s22 = sphi 0, %s19
    %s23 = sphi 0, %s20
    %s24 = sphi 0, %s21
    %s25 = sphi 0, %s22
    %s26 = sphi 0, %s23
    %s46 = sphi 0, %s48
    %s49 = sphi 0, %s46
    %s50 = sphi 0, %s49
    %s66 = sphi 0, %s50
    %s72 = sphi 0, %s74
    %s75 = sphi 0, %s72
    %s76 = sphi 0, %s75
    %s92 = sphi 0, %s76
    %s96 = sphi 0, %s96
    %s98 = sphi 0, %s96
    %s99 = sphi 0, %s98
    %s113 = sphi 0, %s99
    %s119 = sphi 0, %s121
    %s122 = sphi 0, %s119
    %s123 = sphi 0, %s122
    %s139 = sphi 0, %s123
    %s145 = sphi 0, %s147
    %s148 = sphi 0, %s145
    %s149 = sphi 0, %s148
    %s165 = sphi 0, %s149
    %s175 = sphi 0, %s177
    %s178 = sphi 0, %s175
    %s179 = sphi 0, %s178
    %s195 = sphi 0, %s179
  $region4: #{conv_bn_hardswish.1} parent=0 // loop_header_branch
    %14 = sbr.rel (%p12) target = $region8
  $region5: #{conv_bn_hardswish.1} parent=0 // loop_body
    %s16 = ssub.s32 %s11, 1
    %s17 = ssub.s32 %s11, 2
    %s27 = sadd.s32 1, %s20
    %p28 = scmp.ge.s32.totalorder %s27, 1
    %s29 = scalar_select %p28, 0, %s27
    %s30 = sadd.s32 1, %s19
    %s31 = scalar_select %p28, %s30, %s19
    %p32 = scmp.ge.s32.totalorder %s31, 2
    %s33 = scalar_select %p32, 0, %s31
    %s34 = sadd.s32 1, %s18
    %s35 = scalar_select %p32, %s34, %s18
    %p36 = scmp.ge.s32.totalorder %s35, 1
    %s37 = scalar_select %p36, 0, %s35
    %s38 = ssub.s32 1, %s19
    %s39 = smul.u32 %s20, %s38
    %s40 = ssub.s32 1, %s33
    %s41 = smul.u32 %s29, %s40
    %s42 = ssub.s32 %s39, %s41
    %s43 = ssub.s32 %s18, %s37
    %s44 = sor.u32 %s42, %s43
    %p45 = scmp.eq.s32.totalorder %s44, 0
    %s47 = sadd.s32 %s46, 1
    %s48 = scalar_select %p45, %s46, %s47
    %p51 = pneg %p45
    %p52 = scmp.eq.s32.totalorder %s11, 1
    %p53 = por %p51, %p52
    %p54 = scmp.ne.s32.totalorder %s46, %s49
    %p55 = scmp.eq.s32.totalorder %s11, 0
    %p56 = por %p54, %p55
    %p57 = scmp.ne.s32.totalorder %s46, %s49
    %p58 = scmp.eq.s32.totalorder %s16, 1
    %p59 = por %p57, %p58
    %p60 = scmp.ne.s32.totalorder %s49, %s50
    %p61 = scmp.eq.s32.totalorder %s16, 0
    %p62 = por %p60, %p61
    %p63 = scmp.ne.s32.totalorder %s49, %s50
    %p64 = scmp.eq.s32.totalorder %s17, 1
    %p65 = por %p63, %p64
    %p67 = scmp.ne.s32.totalorder %s50, %s66
    %p68 = scmp.eq.s32.totalorder %s17, 0
    %p69 = por %p67, %p68
    %s70 = ssub.s32 %s18, %s37
    %p71 = scmp.eq.s32.totalorder %s70, 0
    %s73 = sadd.s32 %s72, 1
    %s74 = scalar_select %p71, %s72, %s73
    %p77 = pneg %p71
    %p78 = scmp.eq.s32.totalorder %s11, 1
    %p79 = por %p77, %p78
    %p80 = scmp.ne.s32.totalorder %s72, %s75
    %p81 = scmp.eq.s32.totalorder %s11, 0
    %p82 = por %p80, %p81
    %p83 = scmp.ne.s32.totalorder %s72, %s75
    %p84 = scmp.eq.s32.totalorder %s16, 1
    %p85 = por %p83, %p84
    %p86 = scmp.ne.s32.totalorder %s75, %s76
    %p87 = scmp.eq.s32.totalorder %s16, 0
    %p88 = por %p86, %p87
    %p89 = scmp.ne.s32.totalorder %s75, %s76
    %p90 = scmp.eq.s32.totalorder %s17, 1
    %p91 = por %p89, %p90
    %p93 = scmp.ne.s32.totalorder %s76, %s92
    %p94 = scmp.eq.s32.totalorder %s17, 0
    %p95 = por %p93, %p94
    %s97 = sadd.s32 %s96, 1
    %p100 = scmp.eq.s32.totalorder %s11, 1
    %p101 = scmp.ne.s32.totalorder %s96, %s98
    %p102 = scmp.eq.s32.totalorder %s11, 0
    %p103 = por %p101, %p102
    %p104 = scmp.ne.s32.totalorder %s96, %s98
    %p105 = scmp.eq.s32.totalorder %s16, 1
    %p106 = por %p104, %p105
    %p107 = scmp.ne.s32.totalorder %s98, %s99
    %p108 = scmp.eq.s32.totalorder %s16, 0
    %p109 = por %p107, %p108
    %p110 = scmp.ne.s32.totalorder %s98, %s99
    %p111 = scmp.eq.s32.totalorder %s17, 1
    %p112 = por %p110, %p111
    %p114 = scmp.ne.s32.totalorder %s99, %s113
    %p115 = scmp.eq.s32.totalorder %s17, 0
    %p116 = por %p114, %p115
    %s117 = ssub.s32 %s18, %s37
    %p118 = scmp.eq.s32.totalorder %s117, 0
    %s120 = sadd.s32 %s119, 1
    %s121 = scalar_select %p118, %s119, %s120
    %p124 = pneg %p118
    %p125 = scmp.eq.s32.totalorder %s11, 1
    %p126 = por %p124, %p125
    %p127 = scmp.ne.s32.totalorder %s119, %s122
    %p128 = scmp.eq.s32.totalorder %s11, 0
    %p129 = por %p127, %p128
    %p130 = scmp.ne.s32.totalorder %s119, %s122
    %p131 = scmp.eq.s32.totalorder %s16, 1
    %p132 = por %p130, %p131
    %p133 = scmp.ne.s32.totalorder %s122, %s123
    %p134 = scmp.eq.s32.totalorder %s16, 0
    %p135 = por %p133, %p134
    %p136 = scmp.ne.s32.totalorder %s122, %s123
    %p137 = scmp.eq.s32.totalorder %s17, 1
    %p138 = por %p136, %p137
    %p140 = scmp.ne.s32.totalorder %s123, %s139
    %p141 = scmp.eq.s32.totalorder %s17, 0
    %p142 = por %p140, %p141
    %s143 = ssub.s32 %s18, %s37
    %p144 = scmp.eq.s32.totalorder %s143, 0
    %s146 = sadd.s32 %s145, 1
    %s147 = scalar_select %p144, %s145, %s146
    %p150 = pneg %p144
    %p151 = scmp.eq.s32.totalorder %s11, 1
    %p152 = por %p150, %p151
    %p153 = scmp.ne.s32.totalorder %s145, %s148
    %p154 = scmp.eq.s32.totalorder %s11, 0
    %p155 = por %p153, %p154
    %p156 = scmp.ne.s32.totalorder %s145, %s148
    %p157 = scmp.eq.s32.totalorder %s16, 1
    %p158 = por %p156, %p157
    %p159 = scmp.ne.s32.totalorder %s148, %s149
    %p160 = scmp.eq.s32.totalorder %s16, 0
    %p161 = por %p159, %p160
    %p162 = scmp.ne.s32.totalorder %s148, %s149
    %p163 = scmp.eq.s32.totalorder %s17, 1
    %p164 = por %p162, %p163
    %p166 = scmp.ne.s32.totalorder %s149, %s165
    %p167 = scmp.eq.s32.totalorder %s17, 0
    %p168 = por %p166, %p167
    %s169 = smul.u32 %s19, %s20
    %s170 = smul.u32 %s33, %s29
    %s171 = ssub.s32 %s169, %s170
    %s172 = ssub.s32 %s18, %s37
    %s173 = sor.u32 %s171, %s172
    %p174 = scmp.eq.s32.totalorder %s173, 0
    %s176 = sadd.s32 %s175, 1
    %s177 = scalar_select %p174, %s175, %s176
    %p180 = pneg %p174
    %p181 = scmp.eq.s32.totalorder %s11, 1
    %p182 = por %p180, %p181
    %p183 = scmp.ne.s32.totalorder %s175, %s178
    %p184 = scmp.eq.s32.totalorder %s11, 0
    %p185 = por %p183, %p184
    %p186 = scmp.ne.s32.totalorder %s175, %s178
    %p187 = scmp.eq.s32.totalorder %s16, 1
    %p188 = por %p186, %p187
    %p189 = scmp.ne.s32.totalorder %s178, %s179
    %p190 = scmp.eq.s32.totalorder %s16, 0
    %p191 = por %p189, %p190
    %p192 = scmp.ne.s32.totalorder %s178, %s179
    %p193 = scmp.eq.s32.totalorder %s17, 1
    %p194 = por %p192, %p193
    %p196 = scmp.ne.s32.totalorder %s179, %s195
    %p197 = scmp.eq.s32.totalorder %s17, 0
    %p198 = por %p196, %p197
    %p199 = scmp.le.s32.totalorder 1, %s11
    %p200 = scmp.lt.s32.totalorder %s11, 3
    %p201 = pnand %p199, %p200
    %p202 = pneg %p201
    // Predicated region
    $region9: #{conv_bn_hardswish.1} parent=5 // pred_check
      _
    $region10: #{conv_bn_hardswish.1} parent=5 // pred_check_branch
      %204 = sbr.rel (%p201) target = $region12
    $region11: #{conv_bn_hardswish.1} parent=5 // pred_region
      %s205 = ssub.s32 %s11, 1
      // Predicated region
      $region13: #{conv_bn_hardswish.1} parent=11 // pred_check
        %p206 = pneg %p88
      $region14: #{conv_bn_hardswish.1} parent=11 // pred_check_branch
        %208 = sbr.rel (%p206) target = $region16
      $region15: #{conv_bn_hardswish.1} parent=11 // pred_region
        %p209 = scmp.lt.s32.totalorder %s21, 0
        %s210 = scalar_select %p209, %s21, 0
        %s211 = smul.addr %s210, 4
        %s212 = scalar_lea.vmem %s1, %s211
      $region16: #{conv_bn_hardswish.1} parent=11 // pred_fallthru
        _
      // Predicated region
      $region17: #{conv_bn_hardswish.1} parent=11 // pred_check
        %p213 = pneg %p109
      $region18: #{conv_bn_hardswish.1} parent=11 // pred_check_branch
        %215 = sbr.rel (%p213) target = $region20
      $region19: #{conv_bn_hardswish.1} parent=11 // pred_region
        _
      $region20: #{conv_bn_hardswish.1} parent=11 // pred_fallthru
        _
      // Predicated region
      $region21: #{conv_bn_hardswish.1} parent=11 // pred_check
        %p216 = pneg %p135
      $region22: #{conv_bn_hardswish.1} parent=11 // pred_check_branch
        %218 = sbr.rel (%p216) target = $region24
      $region23: #{conv_bn_hardswish.1} parent=11 // pred_region
        %p219 = scmp.lt.s32.totalorder %s21, 0
        %s220 = scalar_select %p219, %s21, 0
        %s221 = smul.addr %s220, 8
        %s222 = scalar_lea.vmem %s3, %s221
      $region24: #{conv_bn_hardswish.1} parent=11 // pred_fallthru
        _
      // Predicated region
      $region25: #{conv_bn_hardswish.1} parent=11 // pred_check
        %p223 = pneg %p161
      $region26: #{conv_bn_hardswish.1} parent=11 // pred_check_branch
        %225 = sbr.rel (%p223) target = $region28
      $region27: #{conv_bn_hardswish.1} parent=11 // pred_region
        %p226 = scmp.lt.s32.totalorder %s21, 0
        %s227 = scalar_select %p226, %s21, 0
        %s228 = smul.addr %s227, 8
        %s229 = scalar_lea.vmem %s4, %s228
      $region28: #{conv_bn_hardswish.1} parent=11 // pred_fallthru
        _
    $region12: #{conv_bn_hardswish.1} parent=5 // pred_fallthru
      _
    %p230 = scmp.lt.s32.totalorder %s11, 2
    // Predicated region
    $region29: #{conv_bn_hardswish.1} parent=5 // pred_check
      %p231 = pneg %p230
    $region30: #{conv_bn_hardswish.1} parent=5 // pred_check_branch
      %233 = sbr.rel (%p231) target = $region32
    $region31: #{conv_bn_hardswish.1} parent=5 // pred_region
      // Predicated region
      $region33: #{conv_bn_hardswish.1} parent=31 // pred_check
        %p234 = pneg %p56
      $region34: #{conv_bn_hardswish.1} parent=31 // pred_check_branch
        %236 = sbr.rel (%p234) target = $region36
      $region35: #{conv_bn_hardswish.1} parent=31 // pred_region
        %s237 = ssub.s32 1, %s19
        %s238 = smul.u32 %s20, %s237
        %s239 = smul.u32 2, %s238
        %p240 = scmp.lt.s32.totalorder %s239, 1
        %s241 = scalar_select %p240, %s239, 1
        %p242 = scmp.lt.s32.totalorder %s18, 0
        %s243 = scalar_select %p242, %s18, 0
        %s244 = smul.addr %s243, 4
        %s245 = smul.addr %s241, 4
        %s246 = sadd.s32 %s244, %s245
        %s247 = smul.addr %s246, 2
        %s248 = scalar_lea.vmem %s0, %s247
        %s249 = ssub.s32 1, %s19
        %s250 = smul.u32 %s20, %s249
        %s251 = smul.u32 2, %s250
      $region36: #{conv_bn_hardswish.1} parent=31 // pred_fallthru
        _
    $region32: #{conv_bn_hardswish.1} parent=5 // pred_fallthru
      _
    %p252 = scmp.le.s32.totalorder 1, %s11
    %p253 = scmp.lt.s32.totalorder %s11, 3
    %p254 = pnand %p252, %p253
    %p255 = pneg %p254
    // Predicated region
    $region37: #{conv_bn_hardswish.1} parent=5 // pred_check
      _
    $region38: #{conv_bn_hardswish.1} parent=5 // pred_check_branch
      %257 = sbr.rel (%p254) target = $region40
    $region39: #{conv_bn_hardswish.1} parent=5 // pred_region
      %s258 = ssub.s32 %s11, 1
      %s259 = ssub.s32 1, %s22
      %s260 = smul.u32 %s23, %s259
      %s261 = smul.u32 2, %s260
      %p262 = scmp.lt.s32.totalorder %s261, 1
      %s263 = scalar_select %p262, %s261, 1
      %p264 = scmp.lt.s32.totalorder %s21, 0
      %s265 = scalar_select %p264, %s21, 0
      %s266 = smul.addr %s265, 4
      %s267 = smul.addr %s263, 4
      %s268 = sadd.s32 %s266, %s267
      %s269 = smul.addr %s268, 2
      %s270 = scalar_lea.vmem %s0, %s269
      %p271 = pneg %p62
      %p272 = pneg %p59
      %p273 = scmp.lt.s32.totalorder %s21, 0
      %s274 = scalar_select %p273, %s21, 0
      %s275 = smul.addr %s274, 4
      %s276 = scalar_lea.vmem %s1, %s275
      %p277 = pneg %p88
      %p278 = pneg %p85
      %p279 = pneg %p109
      %p280 = pneg %p106
      %p281 = scmp.lt.s32.totalorder %s21, 0
      %s282 = scalar_select %p281, %s21, 0
      %s283 = smul.addr %s282, 8
      %s284 = scalar_lea.vmem %s3, %s283
      %p285 = pneg %p135
      %p286 = pneg %p132
      %p287 = scmp.lt.s32.totalorder %s21, 0
      %s288 = scalar_select %p287, %s21, 0
      %s289 = smul.addr %s288, 8
      %s290 = scalar_lea.vmem %s4, %s289
      %p291 = pneg %p161
      %p292 = pneg %p158
      %p293 = pneg %p191
      %p294 = pneg %p188
      %s295 = smul.u32 %s22, %s23
      %s296 = smul.u32 2, %s295
      %p297 = scmp.lt.s32.totalorder %s296, 1
      %s298 = scalar_select %p297, %s296, 1
      %p299 = scmp.lt.s32.totalorder %s21, 0
      %s300 = scalar_select %p299, %s21, 0
      %s301 = smul.addr %s300, 3
      %s302 = smul.addr %s298, 3
      %s303 = sadd.s32 %s301, %s302
      %s304 = smul.addr %s303, 8
      %s305 = scalar_lea.vmem %s5, %s304
      %s306 = ssub.s32 1, %s22
      %s307 = smul.u32 %s23, %s306
      %s308 = smul.u32 2, %s307
      %p309 = scmp.lt.s32.totalorder %s308, 1
      %s310 = scalar_select %p309, %s308, 1
      %p311 = scmp.lt.s32.totalorder %s21, 0
      %s312 = scalar_select %p311, %s21, 0
      %s313 = smul.addr %s312, 4
      %s314 = smul.addr %s310, 4
      %s315 = sadd.s32 %s313, %s314
      %s316 = smul.addr %s315, 2
      %s317 = scalar_lea.vmem %s0, %s316
      %s318 = ssub.s32 1, %s22
      %s319 = smul.u32 %s23, %s318
      %s320 = smul.u32 2, %s319
      %p321 = scmp.lt.s32.totalorder %s21, 0
      %s322 = scalar_select %p321, %s21, 0
      %s323 = smul.addr %s322, 4
      %s324 = scalar_lea.vmem %s1, %s323
      %p325 = scmp.lt.s32.totalorder %s21, 0
      %s326 = scalar_select %p325, %s21, 0
      %s327 = smul.addr %s326, 8
      %s328 = scalar_lea.vmem %s3, %s327
      %p329 = scmp.lt.s32.totalorder %s21, 0
      %s330 = scalar_select %p329, %s21, 0
      %s331 = smul.addr %s330, 8
      %s332 = scalar_lea.vmem %s4, %s331
      %s333 = smul.u32 %s22, %s23
      %s334 = smul.u32 2, %s333
      %p335 = scmp.lt.s32.totalorder %s334, 1
      %s336 = scalar_select %p335, %s334, 1
      %p337 = scmp.lt.s32.totalorder %s21, 0
      %s338 = scalar_select %p337, %s21, 0
      %s339 = smul.addr %s338, 3
      %s340 = smul.addr %s336, 3
      %s341 = sadd.s32 %s339, %s340
      %s342 = smul.addr %s341, 8
      %s343 = scalar_lea.vmem %s5, %s342
      %s344 = smul.u32 %s22, %s23
      %s345 = smul.u32 2, %s344
      %p347 = scmp.eq.s32.totalorder %s22, 0
      %p348 = scmp.eq.s32.totalorder %s23, 0
      %p349 = pnand %p347, %p348
      %p350 = pneg %p349
      // Predicated region
      $region41: #{conv_bn_hardswish.1} parent=39 // pred_check
        _
      $region42: #{conv_bn_hardswish.1} parent=39 // pred_check_branch
        %352 = sbr.rel (%p349) target = $region44
      $region43: #{conv_bn_hardswish.1} parent=39 // pred_region
        %vm353 = vcmask 7168
        %354 = vst.msk [vmem:[#allocation3] sm:$0xff] %vm353, 0.0
        %355 = vst.msk [vmem:[#allocation4] sm:$0xff] %vm353, 0.0
      $region44: #{conv_bn_hardswish.1} parent=39 // pred_fallthru
        _
      // Predicated region
      $region45: #{conv_bn_hardswish.1} parent=39 // pred_check
        %p356 = pneg %p347
      $region46: #{conv_bn_hardswish.1} parent=39 // pred_check_branch
        %358 = sbr.rel (%p356) target = $region48
      $region47: #{conv_bn_hardswish.1} parent=39 // pred_region
        %v359 = vld [vmem:[%s317] sm:$0x3f]
        %v361 = vcombine.high %v359, %v359
        %v363 = vunpack.c.l.s4 1983009808
        %v364 = vunpack.c.0.s8 %v363
        %v365 = vlaneseq
        %v366 = vshrl.u32 %v365, 7
        %v367 = vsub.s32 %v364, %v366
        %v368 = vrot.slane %v359, %v367
        %v370 = vunpack.c.l.s4 1983009808
        %v371 = vunpack.c.0.s8 %v370
        %v372 = vlaneseq
        %v373 = vshrl.u32 %v372, 7
        %v374 = vsub.s32 %v371, %v373
        %v375 = vrot.slane %v361, %v374
        %378 = vst [vmem:[#allocation2] sm:$0x33] %v368
        %379 = vst [vmem:[#allocation2 + $0x8] sm:$0x3] %v375
        %v380 = vld [vmem:[%s317] sm:$0xff]
        %v382 = vcombine.low %v380, %v380
        %v384 = vunpack.c.l.s4 1983009808
        %v385 = vunpack.c.0.s8 %v384
        %v386 = vlaneseq
        %v387 = vshrl.u32 %v386, 7
        %v388 = vsub.s32 %v385, %v387
        %v389 = vrot.slane %v382, %v388
        %v391 = vunpack.c.l.s4 1983009808
        %v392 = vunpack.c.0.s8 %v391
        %v393 = vlaneseq
        %v394 = vshrl.u32 %v393, 7
        %v395 = vsub.s32 %v392, %v394
        %v396 = vrot.slane %v380, %v395
        %397 = vrot.lane.b32.xlu0 %v389, 127
        %v398 = vpop.permute.xlu0 %397
        %399 = vrot.lane.b32.xlu0 %v396, 127
        %v400 = vpop.permute.xlu0 %399
        %v401 = vrot.slane %v398, 4
        %v402 = vrot.slane %v400, 4
        %vm403 = vcmask 1043456
        %v404 = vsel %vm403, %v401, %v402
        %vm405 = vcmask 1039360
        %v406 = vsel %vm405, %v398, %v404
        %v407 = vsel %vm405, %v400, %v402
        %410 = vst [vmem:[#allocation2] sm:$0xcc] %v406
        %411 = vst [vmem:[#allocation2 + $0x8] sm:$0xc] %v407
        %v412 = vld [vmem:[%s317] sm:$0xff]
        %v414 = vcombine.high %v412, %v412
        %v416 = vunpack.c.l.s4 1983009808
        %v417 = vunpack.c.0.s8 %v416
        %v418 = vlaneseq
        %v419 = vshrl.u32 %v418, 7
        %v420 = vsub.s32 %v417, %v419
        %v421 = vrot.slane %v412, %v420
        %v423 = vunpack.c.l.s4 1983009808
        %v424 = vunpack.c.0.s8 %v423
        %v425 = vlaneseq
        %v426 = vshrl.u32 %v425, 7
        %v427 = vsub.s32 %v424, %v426
        %v428 = vrot.slane %v414, %v427
        %429 = vrot.lane.b32.xlu0 %v421, 126
        %v430 = vpop.permute.xlu0 %429
        %431 = vrot.lane.b32.xlu0 %v428, 126
        %v432 = vpop.permute.xlu0 %431
        %v433 = vrot.slane %v430, 4
        %v434 = vrot.slane %v432, 4
        %v435 = vsel %vm403, %v433, %v434
        %vm436 = vcmask 1031168
        %v437 = vsel %vm436, %v430, %v435
        %v438 = vsel %vm436, %v432, %v434
        %441 = vst [vmem:[#allocation2 + $0x18] sm:$0x33] %v437
        %442 = vst [vmem:[#allocation2 + $0x20] sm:$0x3] %v438
        %v443 = vld [vmem:[%s317] sm:$0xff]
        %v445 = vcombine.low %v443, %v443
        %v447 = vunpack.c.l.s4 1983009808
        %v448 = vunpack.c.0.s8 %v447
        %v449 = vlaneseq
        %v450 = vshrl.u32 %v449, 7
        %v451 = vsub.s32 %v448, %v450
        %v452 = vrot.slane %v445, %v451
        %v454 = vunpack.c.l.s4 1983009808
        %v455 = vunpack.c.0.s8 %v454
        %v456 = vlaneseq
        %v457 = vshrl.u32 %v456, 7
        %v458 = vsub.s32 %v455, %v457
        %v459 = vrot.slane %v443, %v458
        %460 = vrot.lane.b32.xlu0 %v452, 110
        %v461 = vpop.permute.xlu0 %460
        %462 = vrot.lane.b32.xlu0 %v459, 110
        %v463 = vpop.permute.xlu0 %462
        %v464 = vrot.slane %v461, 4
        %v465 = vrot.slane %v463, 4
        %v466 = vsel %vm403, %v464, %v465
        %vm467 = vcmask 900096
        %v468 = vsel %vm467, %v461, %v466
        %v469 = vsel %vm467, %v463, %v465
        %472 = vst [vmem:[#allocation2 + $0x18] sm:$0xcc] %v468
        %473 = vst [vmem:[#allocation2 + $0x20] sm:$0xc] %v469
        %v474 = vld [vmem:[%s317] sm:$0xff]
        %v476 = vcombine.high %v474, %v474
        %v478 = vunpack.c.l.s4 1983009808
        %v479 = vunpack.c.0.s8 %v478
        %v480 = vlaneseq
        %v481 = vshrl.u32 %v480, 7
        %v482 = vsub.s32 %v479, %v481
        %v483 = vrot.slane %v474, %v482
        %v485 = vunpack.c.l.s4 1983009808
        %v486 = vunpack.c.0.s8 %v485
        %v487 = vlaneseq
        %v488 = vshrl.u32 %v487, 7
        %v489 = vsub.s32 %v486, %v488
        %v490 = vrot.slane %v476, %v489
        %491 = vrot.lane.b32.xlu0 %v483, 109
        %v492 = vpop.permute.xlu0 %491
        %493 = vrot.lane.b32.xlu0 %v490, 109
        %v494 = vpop.permute.xlu0 %493
        %v495 = vrot.slane %v492, 4
        %v496 = vrot.slane %v494, 4
        %v497 = vsel %vm403, %v495, %v496
        %vm498 = vcmask 891904
        %v499 = vsel %vm498, %v492, %v497
        %v500 = vsel %vm498, %v494, %v496
        %503 = vst [vmem:[#allocation2 + $0x30] sm:$0x33] %v499
        %504 = vst [vmem:[#allocation2 + $0x38] sm:$0x3] %v500
        %v505 = vld [vmem:[%s317] sm:$0xff]
        %v507 = vcombine.low %v505, %v505
        %v509 = vunpack.c.l.s4 1983009808
        %v510 = vunpack.c.0.s8 %v509
        %v511 = vlaneseq
        %v512 = vshrl.u32 %v511, 7
        %v513 = vsub.s32 %v510, %v512
        %v514 = vrot.slane %v507, %v513
        %v516 = vunpack.c.l.s4 1983009808
        %v517 = vunpack.c.0.s8 %v516
        %v518 = vlaneseq
        %v519 = vshrl.u32 %v518, 7
        %v520 = vsub.s32 %v517, %v519
        %v521 = vrot.slane %v505, %v520
        %522 = vrot.lane.b32.xlu0 %v514, 108
        %v523 = vpop.permute.xlu0 %522
        %524 = vrot.lane.b32.xlu0 %v521, 108
        %v525 = vpop.permute.xlu0 %524
        %v526 = vrot.slane %v523, 4
        %v527 = vrot.slane %v525, 4
        %v528 = vsel %vm403, %v526, %v527
        %vm529 = vcmask 883712
        %v530 = vsel %vm529, %v523, %v528
        %v531 = vsel %vm529, %v525, %v527
        %534 = vst [vmem:[#allocation2 + $0x30] sm:$0xcc] %v530
        %535 = vst [vmem:[#allocation2 + $0x38] sm:$0xc] %v531
        %v536 = vld [vmem:[%s317] sm:$0xff]
        %v538 = vcombine.high %v536, %v536
        %v540 = vunpack.c.l.s4 1983009808
        %v541 = vunpack.c.0.s8 %v540
        %v542 = vlaneseq
        %v543 = vshrl.u32 %v542, 7
        %v544 = vsub.s32 %v541, %v543
        %v545 = vrot.slane %v536, %v544
        %v547 = vunpack.c.l.s4 1983009808
        %v548 = vunpack.c.0.s8 %v547
        %v549 = vlaneseq
        %v550 = vshrl.u32 %v549, 7
        %v551 = vsub.s32 %v548, %v550
        %v552 = vrot.slane %v538, %v551
        %553 = vrot.lane.b32.xlu0 %v545, 92
        %v554 = vpop.permute.xlu0 %553
        %555 = vrot.lane.b32.xlu0 %v552, 92
        %v556 = vpop.permute.xlu0 %555
        %v557 = vrot.slane %v554, 4
        %v558 = vrot.slane %v556, 4
        %v559 = vsel %vm403, %v557, %v558
        %vm560 = vcmask 752640
        %v561 = vsel %vm560, %v554, %v559
        %v562 = vsel %vm560, %v556, %v558
        %565 = vst [vmem:[#allocation2 + $0x48] sm:$0x33] %v561
        %566 = vst [vmem:[#allocation2 + $0x50] sm:$0x3] %v562
        %v567 = vld [vmem:[%s317] sm:$0xff]
        %v569 = vcombine.low %v567, %v567
        %v571 = vunpack.c.l.s4 1983009808
        %v572 = vunpack.c.0.s8 %v571
        %v573 = vlaneseq
        %v574 = vshrl.u32 %v573, 7
        %v575 = vsub.s32 %v572, %v574
        %v576 = vrot.slane %v569, %v575
        %v578 = vunpack.c.l.s4 1983009808
        %v579 = vunpack.c.0.s8 %v578
        %v580 = vlaneseq
        %v581 = vshrl.u32 %v580, 7
        %v582 = vsub.s32 %v579, %v581
        %v583 = vrot.slane %v567, %v582
        %584 = vrot.lane.b32.xlu0 %v576, 91
        %v585 = vpop.permute.xlu0 %584
        %586 = vrot.lane.b32.xlu0 %v583, 91
        %v587 = vpop.permute.xlu0 %586
        %v588 = vrot.slane %v585, 4
        %v589 = vrot.slane %v587, 4
        %v590 = vsel %vm403, %v588, %v589
        %vm591 = vcmask 744448
        %v592 = vsel %vm591, %v585, %v590
        %v593 = vsel %vm591, %v587, %v589
        %596 = vst [vmem:[#allocation2 + $0x48] sm:$0xcc] %v592
        %597 = vst [vmem:[#allocation2 + $0x50] sm:$0xc] %v593
        %v598 = vld [vmem:[%s317] sm:$0xff]
        %v600 = vcombine.high %v598, %v598
        %v602 = vunpack.c.l.s4 1983009808
        %v603 = vunpack.c.0.s8 %v602
        %v604 = vlaneseq
        %v605 = vshrl.u32 %v604, 7
        %v606 = vsub.s32 %v603, %v605
        %v607 = vrot.slane %v598, %v606
        %v609 = vunpack.c.l.s4 1983009808
        %v610 = vunpack.c.0.s8 %v609
        %v611 = vlaneseq
        %v612 = vshrl.u32 %v611, 7
        %v613 = vsub.s32 %v610, %v612
        %v614 = vrot.slane %v600, %v613
        %615 = vrot.lane.b32.xlu0 %v607, 90
        %v616 = vpop.permute.xlu0 %615
        %617 = vrot.lane.b32.xlu0 %v614, 90
        %v618 = vpop.permute.xlu0 %617
        %v619 = vrot.slane %v616, 4
        %v620 = vrot.slane %v618, 4
        %v621 = vsel %vm403, %v619, %v620
        %vm622 = vcmask 736256
        %v623 = vsel %vm622, %v616, %v621
        %v624 = vsel %vm622, %v618, %v620
        %627 = vst [vmem:[#allocation2 + $0x60] sm:$0x33] %v623
        %628 = vst [vmem:[#allocation2 + $0x68] sm:$0x3] %v624
        %s629 = scalar_lea.vmem %s317, 8
        %v630 = vld [vmem:[%s629] sm:$0x3f]
        %v632 = vcombine.high %v630, %v630
        %v634 = vunpack.c.l.s4 1983009808
        %v635 = vunpack.c.0.s8 %v634
        %v636 = vlaneseq
        %v637 = vshrl.u32 %v636, 7
        %v638 = vsub.s32 %v635, %v637
        %v639 = vrot.slane %v630, %v638
        %v641 = vunpack.c.l.s4 1983009808
        %v642 = vunpack.c.0.s8 %v641
        %v643 = vlaneseq
        %v644 = vshrl.u32 %v643, 7
        %v645 = vsub.s32 %v642, %v644
        %v646 = vrot.slane %v632, %v645
        %649 = vst [vmem:[#allocation2 + $0xc] sm:$0x33] %v639
        %650 = vst [vmem:[#allocation2 + $0x14] sm:$0x3] %v646
        %v651 = vld [vmem:[%s629] sm:$0xff]
        %v653 = vcombine.low %v651, %v651
        %v655 = vunpack.c.l.s4 1983009808
        %v656 = vunpack.c.0.s8 %v655
        %v657 = vlaneseq
        %v658 = vshrl.u32 %v657, 7
        %v659 = vsub.s32 %v656, %v658
        %v660 = vrot.slane %v653, %v659
        %v662 = vunpack.c.l.s4 1983009808
        %v663 = vunpack.c.0.s8 %v662
        %v664 = vlaneseq
        %v665 = vshrl.u32 %v664, 7
        %v666 = vsub.s32 %v663, %v665
        %v667 = vrot.slane %v651, %v666
        %668 = vrot.lane.b32.xlu0 %v660, 127
        %v669 = vpop.permute.xlu0 %668
        %670 = vrot.lane.b32.xlu0 %v667, 127
        %v671 = vpop.permute.xlu0 %670
        %v672 = vrot.slane %v669, 4
        %v673 = vrot.slane %v671, 4
        %v674 = vsel %vm403, %v672, %v673
        %v675 = vsel %vm405, %v669, %v674
        %v676 = vsel %vm405, %v671, %v673
        %679 = vst [vmem:[#allocation2 + $0xc] sm:$0xcc] %v675
        %680 = vst [vmem:[#allocation2 + $0x14] sm:$0xc] %v676
        %v681 = vld [vmem:[%s629] sm:$0xff]
        %v683 = vcombine.high %v681, %v681
        %v685 = vunpack.c.l.s4 1983009808
        %v686 = vunpack.c.0.s8 %v685
        %v687 = vlaneseq
        %v688 = vshrl.u32 %v687, 7
        %v689 = vsub.s32 %v686, %v688
        %v690 = vrot.slane %v681, %v689
        %v692 = vunpack.c.l.s4 1983009808
        %v693 = vunpack.c.0.s8 %v692
        %v694 = vlaneseq
        %v695 = vshrl.u32 %v694, 7
        %v696 = vsub.s32 %v693, %v695
        %v697 = vrot.slane %v683, %v696
        %698 = vrot.lane.b32.xlu0 %v690, 126
        %v699 = vpop.permute.xlu0 %698
        %700 = vrot.lane.b32.xlu0 %v697, 126
        %v701 = vpop.permute.xlu0 %700
        %v702 = vrot.slane %v699, 4
        %v703 = vrot.slane %v701, 4
        %v704 = vsel %vm403, %v702, %v703
        %v705 = vsel %vm436, %v699, %v704
        %v706 = vsel %vm436, %v701, %v703
        %709 = vst [vmem:[#allocation2 + $0x24] sm:$0x33] %v705
        %710 = vst [vmem:[#allocation2 + $0x2c] sm:$0x3] %v706
        %v711 = vld [vmem:[%s629] sm:$0xff]
        %v713 = vcombine.low %v711, %v711
        %v715 = vunpack.c.l.s4 1983009808
        %v716 = vunpack.c.0.s8 %v715
        %v717 = vlaneseq
        %v718 = vshrl.u32 %v717, 7
        %v719 = vsub.s32 %v716, %v718
        %v720 = vrot.slane %v713, %v719
        %v722 = vunpack.c.l.s4 1983009808
        %v723 = vunpack.c.0.s8 %v722
        %v724 = vlaneseq
        %v725 = vshrl.u32 %v724, 7
        %v726 = vsub.s32 %v723, %v725
        %v727 = vrot.slane %v711, %v726
        %728 = vrot.lane.b32.xlu0 %v720, 110
        %v729 = vpop.permute.xlu0 %728
        %730 = vrot.lane.b32.xlu0 %v727, 110
        %v731 = vpop.permute.xlu0 %730
        %v732 = vrot.slane %v729, 4
        %v733 = vrot.slane %v731, 4
        %v734 = vsel %vm403, %v732, %v733
        %v735 = vsel %vm467, %v729, %v734
        %v736 = vsel %vm467, %v731, %v733
        %739 = vst [vmem:[#allocation2 + $0x24] sm:$0xcc] %v735
        %740 = vst [vmem:[#allocation2 + $0x2c] sm:$0xc] %v736
        %v741 = vld [vmem:[%s629] sm:$0xff]
        %v743 = vcombine.high %v741, %v741
        %v745 = vunpack.c.l.s4 1983009808
        %v746 = vunpack.c.0.s8 %v745
        %v747 = vlaneseq
        %v748 = vshrl.u32 %v747, 7
        %v749 = vsub.s32 %v746, %v748
        %v750 = vrot.slane %v741, %v749
        %v752 = vunpack.c.l.s4 1983009808
        %v753 = vunpack.c.0.s8 %v752
        %v754 = vlaneseq
        %v755 = vshrl.u32 %v754, 7
        %v756 = vsub.s32 %v753, %v755
        %v757 = vrot.slane %v743, %v756
        %758 = vrot.lane.b32.xlu0 %v750, 109
        %v759 = vpop.permute.xlu0 %758
        %760 = vrot.lane.b32.xlu0 %v757, 109
        %v761 = vpop.permute.xlu0 %760
        %v762 = vrot.slane %v759, 4
        %v763 = vrot.slane %v761, 4
        %v764 = vsel %vm403, %v762, %v763
        %v765 = vsel %vm498, %v759, %v764
        %v766 = vsel %vm498, %v761, %v763
        %769 = vst [vmem:[#allocation2 + $0x3c] sm:$0x33] %v765
        %770 = vst [vmem:[#allocation2 + $0x44] sm:$0x3] %v766
        %v771 = vld [vmem:[%s629] sm:$0xff]
        %v773 = vcombine.low %v771, %v771
        %v775 = vunpack.c.l.s4 1983009808
        %v776 = vunpack.c.0.s8 %v775
        %v777 = vlaneseq
        %v778 = vshrl.u32 %v777, 7
        %v779 = vsub.s32 %v776, %v778
        %v780 = vrot.slane %v773, %v779
        %v782 = vunpack.c.l.s4 1983009808
        %v783 = vunpack.c.0.s8 %v782
        %v784 = vlaneseq
        %v785 = vshrl.u32 %v784, 7
        %v786 = vsub.s32 %v783, %v785
        %v787 = vrot.slane %v771, %v786
        %788 = vrot.lane.b32.xlu0 %v780, 108
        %v789 = vpop.permute.xlu0 %788
        %790 = vrot.lane.b32.xlu0 %v787, 108
        %v791 = vpop.permute.xlu0 %790
        %v792 = vrot.slane %v789, 4
        %v793 = vrot.slane %v791, 4
        %v794 = vsel %vm403, %v792, %v793
        %v795 = vsel %vm529, %v789, %v794
        %v796 = vsel %vm529, %v791, %v793
        %799 = vst [vmem:[#allocation2 + $0x3c] sm:$0xcc] %v795
        %800 = vst [vmem:[#allocation2 + $0x44] sm:$0xc] %v796
        %v801 = vld [vmem:[%s629] sm:$0xff]
        %v803 = vcombine.high %v801, %v801
        %v805 = vunpack.c.l.s4 1983009808
        %v806 = vunpack.c.0.s8 %v805
        %v807 = vlaneseq
        %v808 = vshrl.u32 %v807, 7
        %v809 = vsub.s32 %v806, %v808
        %v810 = vrot.slane %v801, %v809
        %v812 = vunpack.c.l.s4 1983009808
        %v813 = vunpack.c.0.s8 %v812
        %v814 = vlaneseq
        %v815 = vshrl.u32 %v814, 7
        %v816 = vsub.s32 %v813, %v815
        %v817 = vrot.slane %v803, %v816
        %818 = vrot.lane.b32.xlu0 %v810, 92
        %v819 = vpop.permute.xlu0 %818
        %820 = vrot.lane.b32.xlu0 %v817, 92
        %v821 = vpop.permute.xlu0 %820
        %v822 = vrot.slane %v819, 4
        %v823 = vrot.slane %v821, 4
        %v824 = vsel %vm403, %v822, %v823
        %v825 = vsel %vm560, %v819, %v824
        %v826 = vsel %vm560, %v821, %v823
        %829 = vst [vmem:[#allocation2 + $0x54] sm:$0x33] %v825
        %830 = vst [vmem:[#allocation2 + $0x5c] sm:$0x3] %v826
        %v831 = vld [vmem:[%s629] sm:$0xff]
        %v833 = vcombine.low %v831, %v831
        %v835 = vunpack.c.l.s4 1983009808
        %v836 = vunpack.c.0.s8 %v835
        %v837 = vlaneseq
        %v838 = vshrl.u32 %v837, 7
        %v839 = vsub.s32 %v836, %v838
        %v840 = vrot.slane %v833, %v839
        %v842 = vunpack.c.l.s4 1983009808
        %v843 = vunpack.c.0.s8 %v842
        %v844 = vlaneseq
        %v845 = vshrl.u32 %v844, 7
        %v846 = vsub.s32 %v843, %v845
        %v847 = vrot.slane %v831, %v846
        %848 = vrot.lane.b32.xlu0 %v840, 91
        %v849 = vpop.permute.xlu0 %848
        %850 = vrot.lane.b32.xlu0 %v847, 91
        %v851 = vpop.permute.xlu0 %850
        %v852 = vrot.slane %v849, 4
        %v853 = vrot.slane %v851, 4
        %v854 = vsel %vm403, %v852, %v853
        %v855 = vsel %vm591, %v849, %v854
        %v856 = vsel %vm591, %v851, %v853
        %859 = vst [vmem:[#allocation2 + $0x54] sm:$0xcc] %v855
        %860 = vst [vmem:[#allocation2 + $0x5c] sm:$0xc] %v856
        %v861 = vld [vmem:[%s629] sm:$0xff]
        %v863 = vcombine.high %v861, %v861
        %v865 = vunpack.c.l.s4 1983009808
        %v866 = vunpack.c.0.s8 %v865
        %v867 = vlaneseq
        %v868 = vshrl.u32 %v867, 7
        %v869 = vsub.s32 %v866, %v868
        %v870 = vrot.slane %v861, %v869
        %v872 = vunpack.c.l.s4 1983009808
        %v873 = vunpack.c.0.s8 %v872
        %v874 = vlaneseq
        %v875 = vshrl.u32 %v874, 7
        %v876 = vsub.s32 %v873, %v875
        %v877 = vrot.slane %v863, %v876
        %878 = vrot.lane.b32.xlu0 %v870, 90
        %v879 = vpop.permute.xlu0 %878
        %880 = vrot.lane.b32.xlu0 %v877, 90
        %v881 = vpop.permute.xlu0 %880
        %v882 = vrot.slane %v879, 4
        %v883 = vrot.slane %v881, 4
        %v884 = vsel %vm403, %v882, %v883
        %v885 = vsel %vm622, %v879, %v884
        %v886 = vsel %vm622, %v881, %v883
        %889 = vst [vmem:[#allocation2 + $0x6c] sm:$0x33] %v885
        %890 = vst [vmem:[#allocation2 + $0x74] sm:$0x3] %v886
        %v891 = vld [vmem:[%s324] sm:$0xf]
        %v892 = vld [vmem:[#allocation2] sm:$0xff]
        %v893 = vld [vmem:[#allocation2 + $0x8] sm:$0xff]
        %v894 = vld [vmem:[#allocation2 + $0x10] sm:$0xff]
        %v895 = vld [vmem:[#allocation2 + $0x18] sm:$0xff]
        %v896 = vld [vmem:[#allocation2 + $0x20] sm:$0xff]
        %v897 = vld [vmem:[#allocation2 + $0x28] sm:$0xff]
        %v898 = vld [vmem:[#allocation2 + $0x30] sm:$0xff]
        %v899 = vld [vmem:[#allocation2 + $0x38] sm:$0xff]
        %v900 = vld [vmem:[#allocation2 + $0x40] sm:$0xff]
        %v901 = vld [vmem:[#allocation2 + $0x48] sm:$0xff]
        %v902 = vld [vmem:[#allocation2 + $0x50] sm:$0xff]
        %v903 = vld [vmem:[#allocation2 + $0x58] sm:$0xff]
        %v904 = vld [vmem:[#allocation2 + $0x60] sm:$0x33]
        %v905 = vld [vmem:[#allocation2 + $0x68] sm:$0x33]
        %v906 = vld [vmem:[#allocation2 + $0x70] sm:$0x33]
        %v922 = vunpack.c.l.b16 %v892
        %v923 = vunpack.c.h.b16 %v892
        %v924 = vunpack.c.l.b16 %v893
        %v925 = vunpack.c.h.b16 %v893
        %v926 = vunpack.c.l.b16 %v894
        %v927 = vunpack.c.h.b16 %v894
        %v928 = vunpack.c.l.b16 %v895
        %v929 = vunpack.c.h.b16 %v895
        %v930 = vunpack.c.l.b16 %v896
        %v931 = vunpack.c.h.b16 %v896
        %v932 = vunpack.c.l.b16 %v897
        %v933 = vunpack.c.h.b16 %v897
        %v934 = vunpack.c.l.b16 %v898
        %v935 = vunpack.c.h.b16 %v898
        %v936 = vunpack.c.l.b16 %v899
        %v937 = vunpack.c.h.b16 %v899
        %v938 = vunpack.c.l.b16 %v900
        %v939 = vunpack.c.h.b16 %v900
        %v940 = vunpack.c.l.b16 %v901
        %v941 = vunpack.c.h.b16 %v901
        %v942 = vunpack.c.l.b16 %v902
        %v943 = vunpack.c.h.b16 %v902
        %v944 = vunpack.c.l.b16 %v903
        %v945 = vunpack.c.h.b16 %v903
        %v946 = vunpack.c.l.b16 %v904
        %v947 = vunpack.c.h.b16 %v904
        %v948 = vunpack.c.l.b16 %v905
        %v949 = vunpack.c.h.b16 %v905
        %v950 = vunpack.c.l.b16 %v906
        %v951 = vunpack.c.h.b16 %v906
        %v952 = vpack.c.b16 %v928, %v922
        %v953 = vpack.c.b16 %v929, %v923
        %v954 = vpack.c.b16 %v930, %v924
        %v955 = vpack.c.b16 %v931, %v925
        %v956 = vpack.c.b16 %v932, %v926
        %v957 = vpack.c.b16 %v933, %v927
        %v958 = vpack.c.b16 %v940, %v934
        %v959 = vpack.c.b16 %v941, %v935
        %v960 = vpack.c.b16 %v942, %v936
        %v961 = vpack.c.b16 %v943, %v937
        %v962 = vpack.c.b16 %v944, %v938
        %v963 = vpack.c.b16 %v945, %v939
        %v964 = vpack.c.b16 %v946, %v946
        %v965 = vpack.c.b16 %v947, %v947
        %v966 = vpack.c.b16 %v948, %v948
        %v967 = vpack.c.b16 %v949, %v949
        %v968 = vpack.c.b16 %v950, %v950
        %v969 = vpack.c.b16 %v951, %v951
        %vm982 = vcmask 293888
        %v984 = vsel %vm982, %v891, 0
        %vm986 = vcmask 1041408
        %v988 = vsel %vm986, %v964, 0
        %v991 = vsel %vm986, %v965, 0
        %v994 = vsel %vm986, %v966, 0
        %v997 = vsel %vm986, %v967, 0
        %v1000 = vsel %vm986, %v968, 0
        %v1003 = vsel %vm986, %v969, 0
        %1005 = vmatprep.subr.bf16.mxu0 %v953
        %1006 = vmatpush1.bf16.msra.mxu0 %v952
        %1007 = vmatprep.subr.bf16.mxu0 %v959
        %1008 = vmatpush1.bf16.msra.mxu0 %v958
        %1009 = vmatprep.subr.bf16.mxu0 %v991
        %1010 = vmatpush1.bf16.msra.mxu0 %v988
        %1011 = vmatprep.subr.bf16.mxu0 0
        %1012 = vmatpush1.bf16.msra.mxu0 0
        %1013 = vmatprep.subr.bf16.mxu0 0
        %1014 = vmatpush1.bf16.msra.mxu0 0
        %1015 = vmatprep.subr.bf16.mxu0 0
        %1016 = vmatpush1.bf16.msra.mxu0 0
        %1017 = vmatprep.subr.bf16.mxu0 0
        %1018 = vmatpush1.bf16.msra.mxu0 0
        %1019 = vmatprep.subr.bf16.mxu0 0
        %1020 = vmatpush1.bf16.msra.mxu0 0
        %1021 = vmatprep.subr.bf16.mxu0 0
        %1022 = vmatpush1.bf16.msra.mxu0 0
        %1023 = vmatprep.subr.bf16.mxu0 0
        %1024 = vmatpush1.bf16.msra.mxu0 0
        %1025 = vmatprep.subr.bf16.mxu0 0
        %1026 = vmatpush1.bf16.msra.mxu0 0
        %1027 = vmatprep.subr.bf16.mxu0 0
        %1028 = vmatpush1.bf16.msra.mxu0 0
        %1029 = vmatprep.subr.bf16.mxu0 0
        %1030 = vmatpush1.bf16.msra.mxu0 0
        %1031 = vmatprep.subr.bf16.mxu0 0
        %1032 = vmatpush1.bf16.msra.mxu0 0
        %1033 = vmatprep.subr.bf16.mxu0 0
        %1034 = vmatpush1.bf16.msra.mxu0 0
        %1035 = vmatprep.subr.bf16.mxu0 0
        %1036 = vmatpush1.bf16.msra.mxu0 0
        %1037 = vmatprep.mubr.bf16.mxu0 0
        %1038 = vmatmul.mubr.bf16.gmra.mrb[0].mxu0 %v984
        %v1039 = vpop.f32.mrb[0].mxu0
        %v1040 = vadd.f32 0.0, %v1039
        %v1041 = vpop.f32.mrb[0].mxu0
        %v1042 = vadd.f32 0.0, %v1041
        %v1043 = vpop.f32.mrb[0].mxu0
        %v1044 = vpop.f32.mrb[0].mxu0
        %1045 = vdwg.mxu0
        %1046 = vmatprep.subr.bf16.mxu0 %v955
        %1047 = vmatpush1.bf16.msra.mxu0 %v954
        %1048 = vmatprep.subr.bf16.mxu0 %v961
        %1049 = vmatpush1.bf16.msra.mxu0 %v960
        %1050 = vmatprep.subr.bf16.mxu0 %v997
        %1051 = vmatpush1.bf16.msra.mxu0 %v994
        %1052 = vmatprep.subr.bf16.mxu0 0
        %1053 = vmatpush1.bf16.msra.mxu0 0
        %1054 = vmatprep.subr.bf16.mxu0 0
        %1055 = vmatpush1.bf16.msra.mxu0 0
        %1056 = vmatprep.subr.bf16.mxu0 0
        %1057 = vmatpush1.bf16.msra.mxu0 0
        %1058 = vmatprep.subr.bf16.mxu0 0
        %1059 = vmatpush1.bf16.msra.mxu0 0
        %1060 = vmatprep.subr.bf16.mxu0 0
        %1061 = vmatpush1.bf16.msra.mxu0 0
        %1062 = vmatprep.subr.bf16.mxu0 0
        %1063 = vmatpush1.bf16.msra.mxu0 0
        %1064 = vmatprep.subr.bf16.mxu0 0
        %1065 = vmatpush1.bf16.msra.mxu0 0
        %1066 = vmatprep.subr.bf16.mxu0 0
        %1067 = vmatpush1.bf16.msra.mxu0 0
        %1068 = vmatprep.subr.bf16.mxu0 0
        %1069 = vmatpush1.bf16.msra.mxu0 0
        %1070 = vmatprep.subr.bf16.mxu0 0
        %1071 = vmatpush1.bf16.msra.mxu0 0
        %1072 = vmatprep.subr.bf16.mxu0 0
        %1073 = vmatpush1.bf16.msra.mxu0 0
        %1074 = vmatprep.subr.bf16.mxu0 0
        %1075 = vmatpush1.bf16.msra.mxu0 0
        %1076 = vmatprep.subr.bf16.mxu0 0
        %1077 = vmatpush1.bf16.msra.mxu0 0
        %1078 = vmatprep.mubr.bf16.mxu0 0
        %1079 = vmatmul.mubr.bf16.gmra.mrb[0].mxu0 %v984
        %v1080 = vpop.f32.mrb[0].mxu0
        %v1081 = vadd.f32 0.0, %v1080
        %v1082 = vpop.f32.mrb[0].mxu0
        %v1083 = vadd.f32 0.0, %v1082
        %v1084 = vpop.f32.mrb[0].mxu0
        %v1085 = vpop.f32.mrb[0].mxu0
        %1086 = vdwg.mxu0
        %1087 = vmatprep.subr.bf16.mxu0 %v957
        %1088 = vmatpush1.bf16.msra.mxu0 %v956
        %1089 = vmatprep.subr.bf16.mxu0 %v963
        %1090 = vmatpush1.bf16.msra.mxu0 %v962
        %1091 = vmatprep.subr.bf16.mxu0 %v1003
        %1092 = vmatpush1.bf16.msra.mxu0 %v1000
        %1093 = vmatprep.subr.bf16.mxu0 0
        %1094 = vmatpush1.bf16.msra.mxu0 0
        %1095 = vmatprep.subr.bf16.mxu0 0
        %1096 = vmatpush1.bf16.msra.mxu0 0
        %1097 = vmatprep.subr.bf16.mxu0 0
        %1098 = vmatpush1.bf16.msra.mxu0 0
        %1099 = vmatprep.subr.bf16.mxu0 0
        %1100 = vmatpush1.bf16.msra.mxu0 0
        %1101 = vmatprep.subr.bf16.mxu0 0
        %1102 = vmatpush1.bf16.msra.mxu0 0
        %1103 = vmatprep.subr.bf16.mxu0 0
        %1104 = vmatpush1.bf16.msra.mxu0 0
        %1105 = vmatprep.subr.bf16.mxu0 0
        %1106 = vmatpush1.bf16.msra.mxu0 0
        %1107 = vmatprep.subr.bf16.mxu0 0
        %1108 = vmatpush1.bf16.msra.mxu0 0
        %1109 = vmatprep.subr.bf16.mxu0 0
        %1110 = vmatpush1.bf16.msra.mxu0 0
        %1111 = vmatprep.subr.bf16.mxu0 0
        %1112 = vmatpush1.bf16.msra.mxu0 0
        %1113 = vmatprep.subr.bf16.mxu0 0
        %1114 = vmatpush1.bf16.msra.mxu0 0
        %1115 = vmatprep.subr.bf16.mxu0 0
        %1116 = vmatpush1.bf16.msra.mxu0 0
        %1117 = vmatprep.subr.bf16.mxu0 0
        %1118 = vmatpush1.bf16.msra.mxu0 0
        %1119 = vmatprep.mubr.bf16.mxu0 0
        %1120 = vmatmul.mubr.bf16.gmra.mrb[0].mxu0 %v984
        %v1121 = vpop.f32.mrb[0].mxu0
        %v1122 = vadd.f32 0.0, %v1121
        %v1123 = vpop.f32.mrb[0].mxu0
        %v1124 = vadd.f32 0.0, %v1123
        %v1125 = vpop.f32.mrb[0].mxu0
        %v1126 = vpop.f32.mrb[0].mxu0
        %1127 = vdwg.mxu0
        %v1128 = vld [vmem:[%s2] sm:$0x7]
        %v1130 = vlaneseq
        %v1131 = vshrl.u32 %v1130, 7
        %v1132 = vsub.s32 0, %v1131
        %v1133 = vrot.slane %v1128, %v1132
        %v1134 = vlaneseq
        %v1135 = vshrl.u32 %v1134, 7
        %v1136 = vsub.s32 1, %v1135
        %v1137 = vrot.slane %v1128, %v1136
        %v1138 = vlaneseq
        %v1139 = vshrl.u32 %v1138, 7
        %v1140 = vsub.s32 2, %v1139
        %v1141 = vrot.slane %v1128, %v1140
        %v1145 = vmul.f32 %v1040, %v1133
        %v1146 = vmul.f32 %v1042, %v1137
        %v1147 = vmul.f32 %v1081, %v1141
        %v1148 = vadd.f32 %v1145, %v1146
        %v1149 = vadd.f32 %v1148, %v1147
        %1150 = vadd.xlane.f32.xlu0 %v1149
        %v1151 = vpop.xlane.xlu0 %1150
        %v1152 = vadd.f32 %v1151, 0.0
        %v1153 = vmul.f32 %v1145, %v1040
        %v1154 = vmul.f32 %v1146, %v1042
        %v1155 = vmul.f32 %v1147, %v1081
        %v1156 = vadd.f32 %v1153, %v1154
        %v1157 = vadd.f32 %v1156, %v1155
        %1158 = vadd.xlane.f32.xlu0 %v1157
        %v1159 = vpop.xlane.xlu0 %1158
        %v1160 = vadd.f32 %v1159, 0.0
        %1161 = vst [vmem:[#allocation5] sm:$0xff] %v1040
        %1162 = vst [vmem:[#allocation5 + $0x8] sm:$0xff] %v1042
        %1163 = vst [vmem:[#allocation5 + $0x10] sm:$0xff] %v1081
        %v1164 = vmul.f32 %v1083, %v1133
        %v1165 = vmul.f32 %v1122, %v1137
        %v1166 = vmul.f32 %v1124, %v1141
        %v1167 = vadd.f32 %v1164, %v1165
        %v1168 = vadd.f32 %v1167, %v1166
        %1169 = vadd.xlane.f32.xlu0 %v1168
        %v1170 = vpop.xlane.xlu0 %1169
        %v1171 = vadd.f32 %v1152, %v1170
        %v1172 = vmul.f32 %v1164, %v1083
        %v1173 = vmul.f32 %v1165, %v1122
        %v1174 = vmul.f32 %v1166, %v1124
        %v1175 = vadd.f32 %v1172, %v1173
        %v1176 = vadd.f32 %v1175, %v1174
        %1177 = vadd.xlane.f32.xlu0 %v1176
        %v1178 = vpop.xlane.xlu0 %1177
        %v1179 = vadd.f32 %v1160, %v1178
        %1180 = vst [vmem:[#allocation5 + $0x18] sm:$0xff] %v1083
        %1181 = vst [vmem:[#allocation5 + $0x20] sm:$0xff] %v1122
        %1182 = vst [vmem:[#allocation5 + $0x28] sm:$0xff] %v1124
        %v1183 = vld [vmem:[#allocation3] sm:$0xff]
        %v1184 = vadd.f32 %v1183, %v1171
        %vm1185 = vcmask 7168
        %1186 = vst.msk [vmem:[#allocation3] sm:$0xff] %vm1185, %v1184
        %v1187 = vld [vmem:[#allocation4] sm:$0xff]
        %v1188 = vadd.f32 %v1187, %v1179
        %1189 = vst.msk [vmem:[#allocation4] sm:$0xff] %vm1185, %v1188
      $region48: #{conv_bn_hardswish.1} parent=39 // pred_fallthru
        _
      %p1190 = scmp.eq.s32.totalorder %s22, 1
      // Predicated region
      $region49: #{conv_bn_hardswish.1} parent=39 // pred_check
        %p1191 = pneg %p1190
      $region50: #{conv_bn_hardswish.1} parent=39 // pred_check_branch
        %1193 = sbr.rel (%p1191) target = $region52
      $region51: #{conv_bn_hardswish.1} parent=39 // pred_region
        %v1194 = vld [vmem:[#allocation3] sm:$0xff]
        %v1195 = vmul.f32 %v1194, 0.001953125
        %v1196 = vld [vmem:[#allocation4] sm:$0xff]
        %v1197 = vmul.f32 %v1196, 0.001953125
        %v1198 = vmul.f32 %v1195, %v1195
        %v1199 = vsub.f32 %v1197, %v1198
        %v1200 = vmax.f32 %v1199, 0.0
        %v1201 = vld [vmem:[%s328] sm:$0xff]
        %v1202 = vadd.f32 %v1200, 1e-05
        %v1203 = vrsqrt.pop %v1202
        %v1204 = vmul.f32 %v1201, %v1203
        %v1205 = vld [vmem:[%s332] sm:$0xff]
        %v1206 = vmul.f32 %v1195, %v1204
        %v1207 = vsub.f32 %v1205, %v1206
        %v1208 = vld [vmem:[#allocation5] sm:$0xff]
        %v1209 = vld [vmem:[#allocation5 + $0x8] sm:$0xff]
        %v1210 = vld [vmem:[#allocation5 + $0x10] sm:$0xff]
        %1212 = vset.pattern.permute.xlu0 0
        %1213 = vperm.xlu0 %1212, %v1204
        %v1214 = vpop.permute.xlu0 %1213
        %v1216 = vmul.f32 %v1208, %v1214
        %v1217 = vmul.f32 %v1209, %v1214
        %v1218 = vmul.f32 %v1210, %v1214
        %1220 = vset.pattern.permute.xlu0 0
        %1221 = vperm.xlu0 %1220, %v1207
        %v1222 = vpop.permute.xlu0 %1221
        %v1224 = vadd.f32 %v1216, %v1222
        %v1225 = vadd.f32 %v1217, %v1222
        %v1226 = vadd.f32 %v1218, %v1222
        %v1227 = vadd.f32 %v1224, 3.0
        %v1228 = vadd.f32 %v1225, 3.0
        %v1229 = vadd.f32 %v1226, 3.0
        %v1230 = vmax.f32 %v1227, 0.0
        %v1231 = vmax.f32 %v1228, 0.0
        %v1232 = vmax.f32 %v1229, 0.0
        %v1233 = vmin.f32 %v1230, 6.0
        %v1234 = vmin.f32 %v1231, 6.0
        %v1235 = vmin.f32 %v1232, 6.0
        %v1236 = vmul.f32 %v1224, %v1233
        %v1237 = vmul.f32 %v1225, %v1234
        %v1238 = vmul.f32 %v1226, %v1235
        %v1239 = vmul.f32 %v1236, 0.16666667
        %v1240 = vmul.f32 %v1237, 0.16666667
        %v1241 = vmul.f32 %v1238, 0.16666667
        %1242 = vst [vmem:[%s343] sm:$0xff] %v1239
        %1243 = vst [vmem:[%s343 + $0x8] sm:$0xff] %v1240
        %1244 = vst [vmem:[%s343 + $0x10] sm:$0xff] %v1241
        %v1245 = vld [vmem:[#allocation5 + $0x18] sm:$0xff]
        %v1246 = vld [vmem:[#allocation5 + $0x20] sm:$0xff]
        %v1247 = vld [vmem:[#allocation5 + $0x28] sm:$0xff]
        %v1248 = vmul.f32 %v1245, %v1214
        %v1249 = vmul.f32 %v1246, %v1214
        %v1250 = vmul.f32 %v1247, %v1214
        %v1251 = vadd.f32 %v1248, %v1222
        %v1252 = vadd.f32 %v1249, %v1222
        %v1253 = vadd.f32 %v1250, %v1222
        %v1254 = vadd.f32 %v1251, 3.0
        %v1255 = vadd.f32 %v1252, 3.0
        %v1256 = vadd.f32 %v1253, 3.0
        %v1257 = vmax.f32 %v1254, 0.0
        %v1258 = vmax.f32 %v1255, 0.0
        %v1259 = vmax.f32 %v1256, 0.0
        %v1260 = vmin.f32 %v1257, 6.0
        %v1261 = vmin.f32 %v1258, 6.0
        %v1262 = vmin.f32 %v1259, 6.0
        %v1263 = vmul.f32 %v1251, %v1260
        %v1264 = vmul.f32 %v1252, %v1261
        %v1265 = vmul.f32 %v1253, %v1262
        %v1266 = vmul.f32 %v1263, 0.16666667
        %v1267 = vmul.f32 %v1264, 0.16666667
        %v1268 = vmul.f32 %v1265, 0.16666667
        %s1269 = scalar_lea.vmem %s343, 24
        %1270 = vst [vmem:[%s1269] sm:$0xff] %v1266
        %1271 = vst [vmem:[%s1269 + $0x8] sm:$0xff] %v1267
        %1272 = vst [vmem:[%s1269 + $0x10] sm:$0xff] %v1268
      $region52: #{conv_bn_hardswish.1} parent=39 // pred_fallthru
        _
      %s1273 = smul.u32 %s22, %s23
      %s1274 = smul.u32 2, %s1273
      %p1275 = scmp.lt.s32.totalorder %s1274, 1
      %s1276 = scalar_select %p1275, %s1274, 1
      %p1277 = scmp.lt.s32.totalorder %s21, 0
      %s1278 = scalar_select %p1277, %s21, 0
      %s1279 = smul.addr %s1278, 3
      %s1280 = smul.addr %s1276, 3
      %s1281 = sadd.s32 %s1279, %s1280
      %s1282 = smul.addr %s1281, 8
      %s1283 = scalar_lea.vmem %s5, %s1282
      // Predicated region
      $region53: #{conv_bn_hardswish.1} parent=39 // pred_check
        %p1284 = pneg %p188
      $region54: #{conv_bn_hardswish.1} parent=39 // pred_check_branch
        %1286 = sbr.rel (%p1284) target = $region56
      $region55: #{conv_bn_hardswish.1} parent=39 // pred_region
        %s1287 = smul.u32 %s22, %s23
        %s1288 = smul.u32 2, %s1287
      $region56: #{conv_bn_hardswish.1} parent=39 // pred_fallthru
        _
    $region40: #{conv_bn_hardswish.1} parent=5 // pred_fallthru
      _
    %p1289 = scmp.le.s32.totalorder 2, %s11
    // Predicated region
    $region57: #{conv_bn_hardswish.1} parent=5 // pred_check
      %p1290 = pneg %p1289
    $region58: #{conv_bn_hardswish.1} parent=5 // pred_check_branch
      %1292 = sbr.rel (%p1290) target = $region60
    $region59: #{conv_bn_hardswish.1} parent=5 // pred_region
      %s1293 = ssub.s32 %s11, 2
      // Predicated region
      $region61: #{conv_bn_hardswish.1} parent=59 // pred_check
        %p1294 = pneg %p194
      $region62: #{conv_bn_hardswish.1} parent=59 // pred_check_branch
        %1296 = sbr.rel (%p1294) target = $region64
      $region63: #{conv_bn_hardswish.1} parent=59 // pred_region
        %s1297 = smul.u32 %s25, %s26
        %s1298 = smul.u32 2, %s1297
        %p1299 = scmp.lt.s32.totalorder %s1298, 1
        %s1300 = scalar_select %p1299, %s1298, 1
        %p1301 = scmp.lt.s32.totalorder %s24, 0
        %s1302 = scalar_select %p1301, %s24, 0
        %s1303 = smul.addr %s1302, 3
        %s1304 = smul.addr %s1300, 3
        %s1305 = sadd.s32 %s1303, %s1304
        %s1306 = smul.addr %s1305, 8
        %s1307 = scalar_lea.vmem %s5, %s1306
      $region64: #{conv_bn_hardswish.1} parent=59 // pred_fallthru
        _
    $region60: #{conv_bn_hardswish.1} parent=5 // pred_fallthru
      _
  $region6: #{conv_bn_hardswish.1} parent=0 // loop_footer
    %s15 = sadd.s32 1, %s11
  $region7: #{conv_bn_hardswish.1} parent=0 // loop_footer_branch
    %10 = sbr.rel target = $region3
  $region8: #{conv_bn_hardswish.1} parent=0 // loop_exit
    _

</llo_original>
